<compile_context>
chip_gen: v5e
topology: v5e:2x2
jax: 0.10.0
libtpu: 0.0.40
codegen_flags: <defaults>
</compile_context>

<pallas_src>
import functools
import math

import jax
import jax.numpy as jnp
from jax import lax
from jax.experimental import pallas as pl
from jax.experimental.pallas import tpu as pltpu

_TM_MAX = 512          # M-tile rows: 256-512 is VMEM-safe on v7x; raise on v5e/v6e.
_LANE = 128
_VMEM_LIMIT = 48 * 1024 * 1024


def _round_up(x, m):
    return ((x + m - 1) // m) * m


def _cparams():
    return pltpu.CompilerParams(
        dimension_semantics=("parallel",),
        vmem_limit_bytes=_VMEM_LIMIT)


# ---------------------------------------------------------------------------
# Pallas kernels
# ---------------------------------------------------------------------------

def _conv_pool_relu_kernel(a_ref, w_ref, b_ref, o_ref):
    """Fused conv-as-matmul + bias + 2x2 maxpool + ReLU.

    a_ref: (4, TM, Kpad)  im2col patches; leading axis = position within the
                          2x2 pooling window, rows = pooled output pixels.
    w_ref: (Kpad, Npad)   flattened conv weights (zero padded).
    b_ref: (1, Npad)      bias (zero padded).
    o_ref: (TM, Npad)     relu(maxpool2x2(conv)) with channels on the lane axis.
    """
    w = w_ref[...]
    m = jnp.dot(a_ref[0], w, preferred_element_type=jnp.float32)
    for d in range(1, 4):
        m = jnp.maximum(m, jnp.dot(a_ref[d], w, preferred_element_type=jnp.float32))
    o_ref[...] = jnp.maximum(m + b_ref[...], 0.0).astype(o_ref.dtype)


def _mlp_head_kernel(x_ref, w1_ref, b1_ref, w2_ref, b2_ref, o_ref, *, n_valid):
    """Fused fc1 + ReLU + fc2 + log_softmax. Padded output lanes are masked."""
    h = jnp.dot(x_ref[...], w1_ref[...], preferred_element_type=jnp.float32)
    h = jnp.maximum(h + b1_ref[...], 0.0)
    logits = jnp.dot(h, w2_ref[...], preferred_element_type=jnp.float32) + b2_ref[...]
    lane = lax.broadcasted_iota(jnp.int32, logits.shape, 1)
    logits = jnp.where(lane < n_valid, logits, jnp.float32(-1e30))
    m = jnp.max(logits, axis=-1, keepdims=True)
    s = logits - m
    out = s - jnp.log(jnp.sum(jnp.exp(s), axis=-1, keepdims=True))
    o_ref[...] = out.astype(o_ref.dtype)


# ---------------------------------------------------------------------------
# Wrappers (pallas_call plumbing + im2col / padding glue)
# ---------------------------------------------------------------------------

def conv_pool_relu(x_nhwc, w, b):
    """x: (B, H, W, Cin) NHWC, w: (Cout, Cin, k, k), b: (Cout,)
    -> relu(maxpool2x2(conv_valid(x))) : (B, Hp, Wp, Cout) NHWC."""
    B, H, W, Cin = x_nhwc.shape
    Cout, _, k, _ = w.shape
    Ho, Wo = H - k + 1, W - k + 1
    Hp, Wp = Ho // 2, Wo // 2

    # im2col, K ordered as (kh, kw, c) -- matches weight flattening below.
    cols = []
    for kh in range(k):
        for kw in range(k):
            cols.append(x_nhwc[:, kh:kh + Ho, kw:kw + Wo, :])      # (B, Ho, Wo, Cin)
    patches = jnp.concatenate(cols, axis=-1)                       # (B, Ho, Wo, k*k*Cin)
    K = k * k * Cin

    # Group the 4 positions of each 2x2 pooling window onto a leading axis.
    p = patches.reshape(B, Hp, 2, Wp, 2, K)
    p = jnp.transpose(p, (2, 4, 0, 1, 3, 5)).reshape(4, B * Hp * Wp, K)

    M = B * Hp * Wp
    Kpad = _round_up(K, _LANE)
    Npad = _round_up(Cout, _LANE)
    TM = min(_TM_MAX, _round_up(M, 8))
    Mpad = _round_up(M, TM)

    a = jnp.pad(p, ((0, 0), (0, Mpad - M), (0, Kpad - K)))
    wm = jnp.transpose(w, (2, 3, 1, 0)).reshape(K, Cout)           # (kh, kw, ci) x Cout
    wm = jnp.pad(wm, ((0, Kpad - K), (0, Npad - Cout)))
    bm = jnp.pad(b, (0, Npad - Cout)).reshape(1, Npad)

    grid = (Mpad // TM,)
    out = pl.pallas_call(
        _conv_pool_relu_kernel,
        out_shape=jax.ShapeDtypeStruct((Mpad, Npad), jnp.float32),
        grid=grid,
        in_specs=[
            pl.BlockSpec((4, TM, Kpad), lambda i: (0, i, 0)),
            pl.BlockSpec((Kpad, Npad), lambda i: (0, 0)),
            pl.BlockSpec((1, Npad), lambda i: (0, 0)),
        ],
        out_specs=pl.BlockSpec((TM, Npad), lambda i: (i, 0)),
        compiler_params=_cparams(),
        cost_estimate=pl.CostEstimate(
            flops=2 * 4 * Mpad * Kpad * Npad,
            transcendentals=0,
            bytes_accessed=4 * (4 * Mpad * Kpad + Kpad * Npad + Npad + Mpad * Npad)),
    )(a, wm, bm)

    return out[:M].reshape(B, Hp, Wp, Npad)[..., :Cout]


def mlp_head(x, w1, b1, w2, b2):
    """x: (B, K) -> log_softmax(relu(x @ w1 + b1) @ w2 + b2) : (B, N)."""
    B, K = x.shape
    Hdim = w1.shape[1]
    N = w2.shape[1]
    Kpad = _round_up(K, _LANE)
    Hpad = _round_up(Hdim, _LANE)
    Npad = _round_up(N, _LANE)
    TM = min(_TM_MAX, _round_up(B, 8))
    Mpad = _round_up(B, TM)

    xp = jnp.pad(x, ((0, Mpad - B), (0, Kpad - K)))
    w1p = jnp.pad(w1, ((0, Kpad - K), (0, Hpad - Hdim)))
    b1p = jnp.pad(b1, (0, Hpad - Hdim)).reshape(1, Hpad)
    w2p = jnp.pad(w2, ((0, Hpad - Hdim), (0, Npad - N)))
    b2p = jnp.pad(b2, (0, Npad - N)).reshape(1, Npad)

    kernel = functools.partial(_mlp_head_kernel, n_valid=N)
    out = pl.pallas_call(
        kernel,
        out_shape=jax.ShapeDtypeStruct((Mpad, Npad), jnp.float32),
        grid=(Mpad // TM,),
        in_specs=[
            pl.BlockSpec((TM, Kpad), lambda i: (i, 0)),
            pl.BlockSpec((Kpad, Hpad), lambda i: (0, 0)),
            pl.BlockSpec((1, Hpad), lambda i: (0, 0)),
            pl.BlockSpec((Hpad, Npad), lambda i: (0, 0)),
            pl.BlockSpec((1, Npad), lambda i: (0, 0)),
        ],
        out_specs=pl.BlockSpec((TM, Npad), lambda i: (i, 0)),
        compiler_params=_cparams(),
    )(xp, w1p, b1p, w2p, b2p)
    return out[:B, :N]


# ---------------------------------------------------------------------------
# Network
# ---------------------------------------------------------------------------

def init_params(key):
    """Deterministic PyTorch-default-style init (U(-1/sqrt(fan_in), +...))."""
    ks = jax.random.split(key, 8)

    def u(k, shape, fan_in):
        bound = 1.0 / math.sqrt(fan_in)
        return jax.random.uniform(k, shape, jnp.float32, -bound, bound)

    return {
        "w1": u(ks[0], (10, 1, 5, 5), 1 * 5 * 5),
        "b1": u(ks[1], (10,), 1 * 5 * 5),
        "w2": u(ks[2], (20, 10, 5, 5), 10 * 5 * 5),
        "b2": u(ks[3], (20,), 10 * 5 * 5),
        "fc1_w": u(ks[4], (320, 50), 320),   # stored as (in, out) = W.T
        "fc1_b": u(ks[5], (50,), 320),
        "fc2_w": u(ks[6], (50, 10), 50),
        "fc2_b": u(ks[7], (10,), 50),
    }


@jax.jit
def net_forward(x, params):
    # x: (B, 1, 28, 28) NCHW (PyTorch layout); internally NHWC, channels on lanes.
    B = x.shape[0]
    x_nhwc = jnp.transpose(x, (0, 2, 3, 1))                             # (B, 28, 28, 1)
    y1 = conv_pool_relu(x_nhwc, params["w1"], params["b1"])             # (B, 12, 12, 10)
    # Dropout2d: identity (eval mode)
    y2 = conv_pool_relu(y1, params["w2"], params["b2"])                 # (B, 4, 4, 20)
    feat = jnp.transpose(y2, (0, 3, 1, 2)).reshape(B, 320)              # torch view(-1,320) order
    # F.dropout: identity (eval mode)
    return mlp_head(feat, params["fc1_w"], params["fc1_b"],
                    params["fc2_w"], params["fc2_b"])                   # (B, 10)


def reference_forward(x, params):
    """Pure-JAX/XLA reference for correctness checking."""
    def conv(x, w, b):
        y = lax.conv_general_dilated(x, w, (1, 1), "VALID",
                                     dimension_numbers=("NCHW", "OIHW", "NCHW"))
        return y + b.reshape(1, -1, 1, 1)

    def pool_relu(x):
        B, C, H, W = x.shape
        x = x.reshape(B, C, H // 2, 2, W // 2, 2).max(axis=(3, 5))
        return jnp.maximum(x, 0.0)

    x = pool_relu(conv(x, params["w1"], params["b1"]))
    x = pool_relu(conv(x, params["w2"], params["b2"]))
    x = x.reshape(x.shape[0], 320)
    x = jnp.maximum(x @ params["fc1_w"] + params["fc1_b"], 0.0)
    x = x @ params["fc2_w"] + params["fc2_b"]
    return jax.nn.log_softmax(x, axis=-1)


if __name__ == "__main__":
    key = jax.random.PRNGKey(0)
    pkey, xkey = jax.random.split(key)
    params = init_params(pkey)
    x = jax.random.normal(xkey, (2, 1, 28, 28), jnp.float32)   # B=2, MNIST-sized

    out = net_forward(x, params)
    out = jax.block_until_ready(out)

    assert out.shape == (2, 10), out.shape
    assert bool(jnp.all(jnp.isfinite(out)))
    # log_softmax rows must exponentiate-and-sum to ~1.
    row_sums = jnp.exp(out).sum(axis=-1)
    assert bool(jnp.all(jnp.abs(row_sums - 1.0) < 1e-3)), row_sums
    # Match the XLA reference (loose tol: TPU matmul default precision).
    ref = reference_forward(x, params)
    assert bool(jnp.allclose(out, ref, atol=0.1)), jnp.max(jnp.abs(out - ref))

    print("KERNEL_OK")
</pallas_src>

<mosaic_0001>
module attributes {stable_mosaic.version = 11 : i64} {
  func.func @_conv_pool_relu_kernel(%arg0: i32, %arg1: memref<4x288x128xf32, #tpu.memory_space<vmem>>, %arg2: memref<128x128xf32, #tpu.memory_space<vmem>>, %arg3: memref<1x128xf32, #tpu.memory_space<vmem>>, %arg4: memref<288x128xf32, #tpu.memory_space<vmem>>) attributes {dimension_semantics = [#tpu.dimension_semantics<parallel>], iteration_bounds = array<i64: 1>, scalar_prefetch = 0 : i64, scratch_operands = 0 : i64, tpu.core_type = #tpu.core_type<tc>, window_params = [{transform_indices = @transform_0, window_bounds = array<i64: 4, 288, 128>}, {pipeline_mode = #tpu.pipeline_mode<synchronous>, transform_indices = @transform_1, window_bounds = array<i64: 128, 128>}, {pipeline_mode = #tpu.pipeline_mode<synchronous>, transform_indices = @transform_2, window_bounds = array<i64: 1, 128>}, {transform_indices = @transform_3, window_bounds = array<i64: 288, 128>}]} {
    %c0 = arith.constant 0 : index
    %c0_0 = arith.constant 0 : index
    %0 = vector.load %arg2[%c0, %c0_0] : memref<128x128xf32, #tpu.memory_space<vmem>>, vector<128x128xf32>
    %c0_1 = arith.constant 0 : index
    %c0_2 = arith.constant 0 : index
    %c0_3 = arith.constant 0 : index
    %1 = vector.load %arg1[%c0_1, %c0_2, %c0_3] : memref<4x288x128xf32, #tpu.memory_space<vmem>>, vector<1x288x128xf32>
    %2 = vector.shape_cast %1 : vector<1x288x128xf32> to vector<288x128xf32>
    %cst = arith.constant dense<0.000000e+00> : vector<288x128xf32>
    %3 = tpu.matmul %2, %0, %cst {dimension_numbers = #tpu.dot_dimension_numbers<[1], [0], [0], [1], [0, 0, 1, 1], [], []>} : vector<288x128xf32>, vector<128x128xf32>, vector<288x128xf32> -> vector<288x128xf32>
    %c1 = arith.constant 1 : index
    %c0_4 = arith.constant 0 : index
    %c0_5 = arith.constant 0 : index
    %4 = vector.load %arg1[%c1, %c0_4, %c0_5] : memref<4x288x128xf32, #tpu.memory_space<vmem>>, vector<1x288x128xf32>
    %5 = vector.shape_cast %4 : vector<1x288x128xf32> to vector<288x128xf32>
    %cst_6 = arith.constant dense<0.000000e+00> : vector<288x128xf32>
    %6 = tpu.matmul %5, %0, %cst_6 {dimension_numbers = #tpu.dot_dimension_numbers<[1], [0], [0], [1], [0, 0, 1, 1], [], []>} : vector<288x128xf32>, vector<128x128xf32>, vector<288x128xf32> -> vector<288x128xf32>
    %7 = arith.maximumf %3, %6 : vector<288x128xf32>
    %c2 = arith.constant 2 : index
    %c0_7 = arith.constant 0 : index
    %c0_8 = arith.constant 0 : index
    %8 = vector.load %arg1[%c2, %c0_7, %c0_8] : memref<4x288x128xf32, #tpu.memory_space<vmem>>, vector<1x288x128xf32>
    %9 = vector.shape_cast %8 : vector<1x288x128xf32> to vector<288x128xf32>
    %cst_9 = arith.constant dense<0.000000e+00> : vector<288x128xf32>
    %10 = tpu.matmul %9, %0, %cst_9 {dimension_numbers = #tpu.dot_dimension_numbers<[1], [0], [0], [1], [0, 0, 1, 1], [], []>} : vector<288x128xf32>, vector<128x128xf32>, vector<288x128xf32> -> vector<288x128xf32>
    %11 = arith.maximumf %7, %10 : vector<288x128xf32>
    %c3 = arith.constant 3 : index
    %c0_10 = arith.constant 0 : index
    %c0_11 = arith.constant 0 : index
    %12 = vector.load %arg1[%c3, %c0_10, %c0_11] : memref<4x288x128xf32, #tpu.memory_space<vmem>>, vector<1x288x128xf32>
    %13 = vector.shape_cast %12 : vector<1x288x128xf32> to vector<288x128xf32>
    %cst_12 = arith.constant dense<0.000000e+00> : vector<288x128xf32>
    %14 = tpu.matmul %13, %0, %cst_12 {dimension_numbers = #tpu.dot_dimension_numbers<[1], [0], [0], [1], [0, 0, 1, 1], [], []>} : vector<288x128xf32>, vector<128x128xf32>, vector<288x128xf32> -> vector<288x128xf32>
    %15 = arith.maximumf %11, %14 : vector<288x128xf32>
    %c0_13 = arith.constant 0 : index
    %c0_14 = arith.constant 0 : index
    %16 = vector.load %arg3[%c0_13, %c0_14] : memref<1x128xf32, #tpu.memory_space<vmem>>, vector<1x128xf32>
    %17 = vector.broadcast %16 : vector<1x128xf32> to vector<288x128xf32>
    %18 = arith.addf %15, %17 : vector<288x128xf32>
    %cst_15 = arith.constant 0.000000e+00 : f32
    %19 = vector.broadcast %cst_15 : f32 to vector<288x128xf32>
    %20 = arith.maximumf %18, %19 : vector<288x128xf32>
    %c0_16 = arith.constant 0 : index
    %c0_17 = arith.constant 0 : index
    %21 = vector.load %arg4[%c0_16, %c0_17] : memref<288x128xf32, #tpu.memory_space<vmem>>, vector<288x128xf32>
    tpu.vector_store %arg4[%c0_16, %c0_17], %20 {strides = array<i32>} : memref<288x128xf32, #tpu.memory_space<vmem>>, vector<288x128xf32>,
    return
  }
  func.func @transform_0(%arg0: i32) -> (i32, i32, i32) {
    %c0_i32 = arith.constant 0 : i32
    %c0_i32_0 = arith.constant 0 : i32
    %c0_i32_1 = arith.constant 0 : i32
    return %c0_i32, %arg0, %c0_i32_0 : i32, i32, i32
  }
  func.func @transform_1(%arg0: i32) -> (i32, i32) {
    %c0_i32 = arith.constant 0 : i32
    %c0_i32_0 = arith.constant 0 : i32
    %c0_i32_1 = arith.constant 0 : i32
    return %c0_i32, %c0_i32_0 : i32, i32
  }
  func.func @transform_2(%arg0: i32) -> (i32, i32) {
    %c0_i32 = arith.constant 0 : i32
    %c0_i32_0 = arith.constant 0 : i32
    %c0_i32_1 = arith.constant 0 : i32
    return %c0_i32, %c0_i32_0 : i32, i32
  }
  func.func @transform_3(%arg0: i32) -> (i32, i32) {
    %c0_i32 = arith.constant 0 : i32
    %c0_i32_0 = arith.constant 0 : i32
    return %arg0, %c0_i32 : i32, i32
  }
}

module attributes {stable_mosaic.version = 11 : i64} {
  func.func @_conv_pool_relu_kernel(%arg0: i32, %arg1: memref<4x32x256xf32, #tpu.memory_space<vmem>>, %arg2: memref<256x128xf32, #tpu.memory_space<vmem>>, %arg3: memref<1x128xf32, #tpu.memory_space<vmem>>, %arg4: memref<32x128xf32, #tpu.memory_space<vmem>>) attributes {dimension_semantics = [#tpu.dimension_semantics<parallel>], iteration_bounds = array<i64: 1>, scalar_prefetch = 0 : i64, scratch_operands = 0 : i64, tpu.core_type = #tpu.core_type<tc>, window_params = [{transform_indices = @transform_0, window_bounds = array<i64: 4, 32, 256>}, {pipeline_mode = #tpu.pipeline_mode<synchronous>, transform_indices = @transform_1, window_bounds = array<i64: 256, 128>}, {pipeline_mode = #tpu.pipeline_mode<synchronous>, transform_indices = @transform_2, window_bounds = array<i64: 1, 128>}, {transform_indices = @transform_3, window_bounds = array<i64: 32, 128>}]} {
    %c0 = arith.constant 0 : index
    %c0_0 = arith.constant 0 : index
    %0 = vector.load %arg2[%c0, %c0_0] : memref<256x128xf32, #tpu.memory_space<vmem>>, vector<256x128xf32>
    %c0_1 = arith.constant 0 : index
    %c0_2 = arith.constant 0 : index
    %c0_3 = arith.constant 0 : index
    %1 = vector.load %arg1[%c0_1, %c0_2, %c0_3] : memref<4x32x256xf32, #tpu.memory_space<vmem>>, vector<1x32x256xf32>
    %2 = vector.shape_cast %1 : vector<1x32x256xf32> to vector<32x256xf32>
    %cst = arith.constant dense<0.000000e+00> : vector<32x128xf32>
    %3 = tpu.matmul %2, %0, %cst {dimension_numbers = #tpu.dot_dimension_numbers<[1], [0], [0], [1], [0, 0, 1, 1], [], []>} : vector<32x256xf32>, vector<256x128xf32>, vector<32x128xf32> -> vector<32x128xf32>
    %c1 = arith.constant 1 : index
    %c0_4 = arith.constant 0 : index
    %c0_5 = arith.constant 0 : index
    %4 = vector.load %arg1[%c1, %c0_4, %c0_5] : memref<4x32x256xf32, #tpu.memory_space<vmem>>, vector<1x32x256xf32>
    %5 = vector.shape_cast %4 : vector<1x32x256xf32> to vector<32x256xf32>
    %cst_6 = arith.constant dense<0.000000e+00> : vector<32x128xf32>
    %6 = tpu.matmul %5, %0, %cst_6 {dimension_numbers = #tpu.dot_dimension_numbers<[1], [0], [0], [1], [0, 0, 1, 1], [], []>} : vector<32x256xf32>, vector<256x128xf32>, vector<32x128xf32> -> vector<32x128xf32>
    %7 = arith.maximumf %3, %6 : vector<32x128xf32>
    %c2 = arith.constant 2 : index
    %c0_7 = arith.constant 0 : index
    %c0_8 = arith.constant 0 : index
    %8 = vector.load %arg1[%c2, %c0_7, %c0_8] : memref<4x32x256xf32, #tpu.memory_space<vmem>>, vector<1x32x256xf32>
    %9 = vector.shape_cast %8 : vector<1x32x256xf32> to vector<32x256xf32>
    %cst_9 = arith.constant dense<0.000000e+00> : vector<32x128xf32>
    %10 = tpu.matmul %9, %0, %cst_9 {dimension_numbers = #tpu.dot_dimension_numbers<[1], [0], [0], [1], [0, 0, 1, 1], [], []>} : vector<32x256xf32>, vector<256x128xf32>, vector<32x128xf32> -> vector<32x128xf32>
    %11 = arith.maximumf %7, %10 : vector<32x128xf32>
    %c3 = arith.constant 3 : index
    %c0_10 = arith.constant 0 : index
    %c0_11 = arith.constant 0 : index
    %12 = vector.load %arg1[%c3, %c0_10, %c0_11] : memref<4x32x256xf32, #tpu.memory_space<vmem>>, vector<1x32x256xf32>
    %13 = vector.shape_cast %12 : vector<1x32x256xf32> to vector<32x256xf32>
    %cst_12 = arith.constant dense<0.000000e+00> : vector<32x128xf32>
    %14 = tpu.matmul %13, %0, %cst_12 {dimension_numbers = #tpu.dot_dimension_numbers<[1], [0], [0], [1], [0, 0, 1, 1], [], []>} : vector<32x256xf32>, vector<256x128xf32>, vector<32x128xf32> -> vector<32x128xf32>
    %15 = arith.maximumf %11, %14 : vector<32x128xf32>
    %c0_13 = arith.constant 0 : index
    %c0_14 = arith.constant 0 : index
    %16 = vector.load %arg3[%c0_13, %c0_14] : memref<1x128xf32, #tpu.memory_space<vmem>>, vector<1x128xf32>
    %17 = vector.broadcast %16 : vector<1x128xf32> to vector<32x128xf32>
    %18 = arith.addf %15, %17 : vector<32x128xf32>
    %cst_15 = arith.constant 0.000000e+00 : f32
    %19 = vector.broadcast %cst_15 : f32 to vector<32x128xf32>
    %20 = arith.maximumf %18, %19 : vector<32x128xf32>
    %c0_16 = arith.constant 0 : index
    %c0_17 = arith.constant 0 : index
    %21 = vector.load %arg4[%c0_16, %c0_17] : memref<32x128xf32, #tpu.memory_space<vmem>>, vector<32x128xf32>
    tpu.vector_store %arg4[%c0_16, %c0_17], %20 {strides = array<i32>} : memref<32x128xf32, #tpu.memory_space<vmem>>, vector<32x128xf32>,
    return
  }
  func.func @transform_0(%arg0: i32) -> (i32, i32, i32) {
    %c0_i32 = arith.constant 0 : i32
    %c0_i32_0 = arith.constant 0 : i32
    %c0_i32_1 = arith.constant 0 : i32
    return %c0_i32, %arg0, %c0_i32_0 : i32, i32, i32
  }
  func.func @transform_1(%arg0: i32) -> (i32, i32) {
    %c0_i32 = arith.constant 0 : i32
    %c0_i32_0 = arith.constant 0 : i32
    %c0_i32_1 = arith.constant 0 : i32
    return %c0_i32, %c0_i32_0 : i32, i32
  }
  func.func @transform_2(%arg0: i32) -> (i32, i32) {
    %c0_i32 = arith.constant 0 : i32
    %c0_i32_0 = arith.constant 0 : i32
    %c0_i32_1 = arith.constant 0 : i32
    return %c0_i32, %c0_i32_0 : i32, i32
  }
  func.func @transform_3(%arg0: i32) -> (i32, i32) {
    %c0_i32 = arith.constant 0 : i32
    %c0_i32_0 = arith.constant 0 : i32
    return %arg0, %c0_i32 : i32, i32
  }
}

module attributes {stable_mosaic.version = 11 : i64} {
  func.func @_mlp_head_kernel(%arg0: i32, %arg1: memref<8x384xf32, #tpu.memory_space<vmem>>, %arg2: memref<384x128xf32, #tpu.memory_space<vmem>>, %arg3: memref<1x128xf32, #tpu.memory_space<vmem>>, %arg4: memref<128x128xf32, #tpu.memory_space<vmem>>, %arg5: memref<1x128xf32, #tpu.memory_space<vmem>>, %arg6: memref<8x128xf32, #tpu.memory_space<vmem>>) attributes {dimension_semantics = [#tpu.dimension_semantics<parallel>], iteration_bounds = array<i64: 1>, scalar_prefetch = 0 : i64, scratch_operands = 0 : i64, tpu.core_type = #tpu.core_type<tc>, window_params = [{transform_indices = @transform_0, window_bounds = array<i64: 8, 384>}, {pipeline_mode = #tpu.pipeline_mode<synchronous>, transform_indices = @transform_1, window_bounds = array<i64: 384, 128>}, {pipeline_mode = #tpu.pipeline_mode<synchronous>, transform_indices = @transform_2, window_bounds = array<i64: 1, 128>}, {pipeline_mode = #tpu.pipeline_mode<synchronous>, transform_indices = @transform_3, window_bounds = array<i64: 128, 128>}, {pipeline_mode = #tpu.pipeline_mode<synchronous>, transform_indices = @transform_4, window_bounds = array<i64: 1, 128>}, {transform_indices = @transform_5, window_bounds = array<i64: 8, 128>}]} {
    %c0 = arith.constant 0 : index
    %c0_0 = arith.constant 0 : index
    %0 = vector.load %arg1[%c0, %c0_0] : memref<8x384xf32, #tpu.memory_space<vmem>>, vector<8x384xf32>
    %c0_1 = arith.constant 0 : index
    %c0_2 = arith.constant 0 : index
    %1 = vector.load %arg2[%c0_1, %c0_2] : memref<384x128xf32, #tpu.memory_space<vmem>>, vector<384x128xf32>
    %cst = arith.constant dense<0.000000e+00> : vector<8x128xf32>
    %2 = tpu.matmul %0, %1, %cst {dimension_numbers = #tpu.dot_dimension_numbers<[1], [0], [0], [1], [0, 0, 1, 1], [], []>} : vector<8x384xf32>, vector<384x128xf32>, vector<8x128xf32> -> vector<8x128xf32>
    %c0_3 = arith.constant 0 : index
    %c0_4 = arith.constant 0 : index
    %3 = vector.load %arg3[%c0_3, %c0_4] : memref<1x128xf32, #tpu.memory_space<vmem>>, vector<1x128xf32>
    %4 = vector.broadcast %3 : vector<1x128xf32> to vector<8x128xf32>
    %5 = arith.addf %2, %4 : vector<8x128xf32>
    %cst_5 = arith.constant 0.000000e+00 : f32
    %6 = vector.broadcast %cst_5 : f32 to vector<8x128xf32>
    %7 = arith.maximumf %5, %6 : vector<8x128xf32>
    %c0_6 = arith.constant 0 : index
    %c0_7 = arith.constant 0 : index
    %8 = vector.load %arg4[%c0_6, %c0_7] : memref<128x128xf32, #tpu.memory_space<vmem>>, vector<128x128xf32>
    %cst_8 = arith.constant dense<0.000000e+00> : vector<8x128xf32>
    %9 = tpu.matmul %7, %8, %cst_8 {dimension_numbers = #tpu.dot_dimension_numbers<[1], [0], [0], [1], [0, 0, 1, 1], [], []>} : vector<8x128xf32>, vector<128x128xf32>, vector<8x128xf32> -> vector<8x128xf32>
    %c0_9 = arith.constant 0 : index
    %c0_10 = arith.constant 0 : index
    %10 = vector.load %arg5[%c0_9, %c0_10] : memref<1x128xf32, #tpu.memory_space<vmem>>, vector<1x128xf32>
    %11 = vector.broadcast %10 : vector<1x128xf32> to vector<8x128xf32>
    %12 = arith.addf %9, %11 : vector<8x128xf32>
    %13 = tpu.iota {dimensions = array<i32: 1>} : vector<8x128xi32>
    %c10_i32 = arith.constant 10 : i32
    %14 = vector.broadcast %c10_i32 : i32 to vector<8x128xi32>
    %15 = arith.cmpi slt, %13, %14 : vector<8x128xi32>
    %cst_11 = arith.constant -1.000000e+30 : f32
    %16 = vector.broadcast %cst_11 : f32 to vector<8x128xf32>
    %17 = arith.select %15, %12, %16 : vector<8x128xi1>, vector<8x128xf32>
    %cst_12 = arith.constant dense<0xFF800000> : vector<8xf32>
    %18 = vector.multi_reduction <maximumf>, %17, %cst_12 [1] : vector<8x128xf32> to vector<8xf32>
    %19 = vector.shape_cast %18 : vector<8xf32> to vector<8x1xf32>
    %20 = vector.broadcast %19 : vector<8x1xf32> to vector<8x128xf32>
    %21 = arith.subf %17, %20 : vector<8x128xf32>
    %22 = math.exp %21 : vector<8x128xf32>
    %cst_13 = arith.constant dense<0.000000e+00> : vector<8xf32>
    %23 = vector.multi_reduction <add>, %22, %cst_13 [1] : vector<8x128xf32> to vector<8xf32>
    %24 = vector.shape_cast %23 : vector<8xf32> to vector<8x1xf32>
    %25 = math.log %24 : vector<8x1xf32>
    %26 = vector.broadcast %25 : vector<8x1xf32> to vector<8x128xf32>
    %27 = arith.subf %21, %26 : vector<8x128xf32>
    %c0_14 = arith.constant 0 : index
    %c0_15 = arith.constant 0 : index
    %28 = vector.load %arg6[%c0_14, %c0_15] : memref<8x128xf32, #tpu.memory_space<vmem>>, vector<8x128xf32>
    tpu.vector_store %arg6[%c0_14, %c0_15], %27 {strides = array<i32>} : memref<8x128xf32, #tpu.memory_space<vmem>>, vector<8x128xf32>,
    return
  }
  func.func @transform_0(%arg0: i32) -> (i32, i32) {
    %c0_i32 = arith.constant 0 : i32
    %c0_i32_0 = arith.constant 0 : i32
    return %arg0, %c0_i32 : i32, i32
  }
  func.func @transform_1(%arg0: i32) -> (i32, i32) {
    %c0_i32 = arith.constant 0 : i32
    %c0_i32_0 = arith.constant 0 : i32
    %c0_i32_1 = arith.constant 0 : i32
    return %c0_i32, %c0_i32_0 : i32, i32
  }
  func.func @transform_2(%arg0: i32) -> (i32, i32) {
    %c0_i32 = arith.constant 0 : i32
    %c0_i32_0 = arith.constant 0 : i32
    %c0_i32_1 = arith.constant 0 : i32
    return %c0_i32, %c0_i32_0 : i32, i32
  }
  func.func @transform_3(%arg0: i32) -> (i32, i32) {
    %c0_i32 = arith.constant 0 : i32
    %c0_i32_0 = arith.constant 0 : i32
    %c0_i32_1 = arith.constant 0 : i32
    return %c0_i32, %c0_i32_0 : i32, i32
  }
  func.func @transform_4(%arg0: i32) -> (i32, i32) {
    %c0_i32 = arith.constant 0 : i32
    %c0_i32_0 = arith.constant 0 : i32
    %c0_i32_1 = arith.constant 0 : i32
    return %c0_i32, %c0_i32_0 : i32, i32
  }
  func.func @transform_5(%arg0: i32) -> (i32, i32) {
    %c0_i32 = arith.constant 0 : i32
    %c0_i32_0 = arith.constant 0 : i32
    return %arg0, %c0_i32 : i32, i32
  }
}

</mosaic_0001>

<llo_original>
// kernel: net_forward.3
$region0: #{net_forward.3}
  #allocation0 [shape = 'u32[]', space=smem, size = 0x4, offset = 0x4, fixed_abs, tag = 'smem constant byte address 0x4 - core index']
  #allocation1 [shape = 'u32[72,128]{1,0:T(1,128)}', space=vmem, size = 0x9000, scoped, tag = 'internal scratch']
  %s0 = inlined_call_operand.vmem [shape: f32[4,288,128], index: 0, kind: input, shape index: {}]
  %s1 = inlined_call_operand.vmem [shape: f32[128,128], index: 1, kind: input, shape index: {}]
  %s2 = inlined_call_operand.vmem [shape: f32[1,128], index: 2, kind: input, shape index: {}]
  %s3 = inlined_call_operand.vmem [shape: f32[288,128], index: 3, kind: output, shape index: {}]
  %s4 = sld [smem:[#allocation0]]
  $region22: #{net_forward.3} parent=0
    _
  %s6 = ssub.s32 1, %s4
  %s7 = scalar_select 0, %s6, %s4
  // Predicated region
  $region2: #{net_forward.3} parent=0 // pred_check
    _
  $region3: #{net_forward.3} parent=0 // pred_check_branch
    %9 = sbr.rel (0) target = $region5
  $region4: #{net_forward.3} parent=0 // pred_region
    _
  $region5: #{net_forward.3} parent=0 // pred_fallthru
    _
  // Predicated region
  $region6: #{net_forward.3} parent=0 // pred_check
    _
  $region7: #{net_forward.3} parent=0 // pred_check_branch
    %11 = sbr.rel (0) target = $region9
  $region8: #{net_forward.3} parent=0 // pred_region
    _
  $region9: #{net_forward.3} parent=0 // pred_fallthru
    _
  // Predicated region
  $region10: #{net_forward.3} parent=0 // pred_check
    _
  $region11: #{net_forward.3} parent=0 // pred_check_branch
    %13 = sbr.rel (0) target = $region13
  $region12: #{net_forward.3} parent=0 // pred_region
    _
  $region13: #{net_forward.3} parent=0 // pred_fallthru
    _
  %v14 = vld [vmem:[%s1] sm:$0xff]
  %v15 = vld [vmem:[%s1 + $0x8] sm:$0xff]
  %v16 = vld [vmem:[%s1 + $0x10] sm:$0xff]
  %v17 = vld [vmem:[%s1 + $0x18] sm:$0xff]
  %v18 = vld [vmem:[%s1 + $0x20] sm:$0xff]
  %v19 = vld [vmem:[%s1 + $0x28] sm:$0xff]
  %v20 = vld [vmem:[%s1 + $0x30] sm:$0xff]
  %v21 = vld [vmem:[%s1 + $0x38] sm:$0xff]
  %v22 = vld [vmem:[%s1 + $0x40] sm:$0xff]
  %v23 = vld [vmem:[%s1 + $0x48] sm:$0xff]
  %v24 = vld [vmem:[%s1 + $0x50] sm:$0xff]
  %v25 = vld [vmem:[%s1 + $0x58] sm:$0xff]
  %v26 = vld [vmem:[%s1 + $0x60] sm:$0xff]
  %v27 = vld [vmem:[%s1 + $0x68] sm:$0xff]
  %v28 = vld [vmem:[%s1 + $0x70] sm:$0xff]
  %v29 = vld [vmem:[%s1 + $0x78] sm:$0xff]
  %v30 = vld [vmem:[%s0] sm:$0xff]
  %v31 = vld [vmem:[%s0 + $0x8] sm:$0xff]
  %v32 = vld [vmem:[%s0 + $0x10] sm:$0xff]
  %v33 = vld [vmem:[%s0 + $0x18] sm:$0xff]
  %v34 = vld [vmem:[%s0 + $0x20] sm:$0xff]
  %v35 = vld [vmem:[%s0 + $0x28] sm:$0xff]
  %v36 = vld [vmem:[%s0 + $0x30] sm:$0xff]
  %v37 = vld [vmem:[%s0 + $0x38] sm:$0xff]
  %v38 = vld [vmem:[%s0 + $0x40] sm:$0xff]
  %v39 = vld [vmem:[%s0 + $0x48] sm:$0xff]
  %v40 = vld [vmem:[%s0 + $0x50] sm:$0xff]
  %v41 = vld [vmem:[%s0 + $0x58] sm:$0xff]
  %v42 = vld [vmem:[%s0 + $0x60] sm:$0xff]
  %v43 = vld [vmem:[%s0 + $0x68] sm:$0xff]
  %v44 = vld [vmem:[%s0 + $0x70] sm:$0xff]
  %v45 = vld [vmem:[%s0 + $0x78] sm:$0xff]
  %v46 = vld [vmem:[%s0 + $0x80] sm:$0xff]
  %v47 = vld [vmem:[%s0 + $0x88] sm:$0xff]
  %v48 = vld [vmem:[%s0 + $0x90] sm:$0xff]
  %v49 = vld [vmem:[%s0 + $0x98] sm:$0xff]
  %v50 = vld [vmem:[%s0 + $0xa0] sm:$0xff]
  %v51 = vld [vmem:[%s0 + $0xa8] sm:$0xff]
  %v52 = vld [vmem:[%s0 + $0xb0] sm:$0xff]
  %v53 = vld [vmem:[%s0 + $0xb8] sm:$0xff]
  %v54 = vld [vmem:[%s0 + $0xc0] sm:$0xff]
  %v55 = vld [vmem:[%s0 + $0xc8] sm:$0xff]
  %v56 = vld [vmem:[%s0 + $0xd0] sm:$0xff]
  %v57 = vld [vmem:[%s0 + $0xd8] sm:$0xff]
  %v58 = vld [vmem:[%s0 + $0xe0] sm:$0xff]
  %v59 = vld [vmem:[%s0 + $0xe8] sm:$0xff]
  %v60 = vld [vmem:[%s0 + $0xf0] sm:$0xff]
  %v61 = vld [vmem:[%s0 + $0xf8] sm:$0xff]
  %v62 = vld [vmem:[%s0 + $0x100] sm:$0xff]
  %v63 = vld [vmem:[%s0 + $0x108] sm:$0xff]
  %v64 = vld [vmem:[%s0 + $0x110] sm:$0xff]
  %v65 = vld [vmem:[%s0 + $0x118] sm:$0xff]
  %66 = vmatpush.msra.mxu0 %v29
  %67 = vmatpush.msra.mxu0 %v28
  %68 = vmatpush.msra.mxu0 %v27
  %69 = vmatpush.msra.mxu0 %v26
  %70 = vmatpush.msra.mxu0 %v25
  %71 = vmatpush.msra.mxu0 %v24
  %72 = vmatpush.msra.mxu0 %v23
  %73 = vmatpush.msra.mxu0 %v22
  %74 = vmatpush.msra.mxu0 %v21
  %75 = vmatpush.msra.mxu0 %v20
  %76 = vmatpush.msra.mxu0 %v19
  %77 = vmatpush.msra.mxu0 %v18
  %78 = vmatpush.msra.mxu0 %v17
  %79 = vmatpush.msra.mxu0 %v16
  %80 = vmatpush.msra.mxu0 %v15
  %81 = vmatpush.msra.mxu0 %v14
  %82 = vmatmul.f32.gmra.mxu0 %v30
  %v83 = vpop.f32.mrf.mxu0
  %v84 = vadd.f32 0.0, %v83
  %85 = vmatmul.f32.gmra.mxu0 %v31
  %v86 = vpop.f32.mrf.mxu0
  %v87 = vadd.f32 0.0, %v86
  %88 = vmatmul.f32.gmra.mxu0 %v32
  %v89 = vpop.f32.mrf.mxu0
  %v90 = vadd.f32 0.0, %v89
  %91 = vmatmul.f32.gmra.mxu0 %v33
  %v92 = vpop.f32.mrf.mxu0
  %v93 = vadd.f32 0.0, %v92
  %94 = vmatmul.f32.gmra.mxu0 %v34
  %v95 = vpop.f32.mrf.mxu0
  %v96 = vadd.f32 0.0, %v95
  %97 = vmatmul.f32.gmra.mxu0 %v35
  %v98 = vpop.f32.mrf.mxu0
  %v99 = vadd.f32 0.0, %v98
  %100 = vmatmul.f32.gmra.mxu0 %v36
  %v101 = vpop.f32.mrf.mxu0
  %v102 = vadd.f32 0.0, %v101
  %103 = vmatmul.f32.gmra.mxu0 %v37
  %v104 = vpop.f32.mrf.mxu0
  %v105 = vadd.f32 0.0, %v104
  %106 = vmatmul.f32.gmra.mxu0 %v38
  %v107 = vpop.f32.mrf.mxu0
  %v108 = vadd.f32 0.0, %v107
  %109 = vmatmul.f32.gmra.mxu0 %v39
  %v110 = vpop.f32.mrf.mxu0
  %v111 = vadd.f32 0.0, %v110
  %112 = vmatmul.f32.gmra.mxu0 %v40
  %v113 = vpop.f32.mrf.mxu0
  %v114 = vadd.f32 0.0, %v113
  %115 = vmatmul.f32.gmra.mxu0 %v41
  %v116 = vpop.f32.mrf.mxu0
  %v117 = vadd.f32 0.0, %v116
  %118 = vmatmul.f32.gmra.mxu0 %v42
  %v119 = vpop.f32.mrf.mxu0
  %v120 = vadd.f32 0.0, %v119
  %121 = vmatmul.f32.gmra.mxu0 %v43
  %v122 = vpop.f32.mrf.mxu0
  %v123 = vadd.f32 0.0, %v122
  %124 = vmatmul.f32.gmra.mxu0 %v44
  %v125 = vpop.f32.mrf.mxu0
  %v126 = vadd.f32 0.0, %v125
  %127 = vmatmul.f32.gmra.mxu0 %v45
  %v128 = vpop.f32.mrf.mxu0
  %v129 = vadd.f32 0.0, %v128
  %130 = vmatmul.f32.gmra.mxu0 %v46
  %v131 = vpop.f32.mrf.mxu0
  %v132 = vadd.f32 0.0, %v131
  %133 = vmatmul.f32.gmra.mxu0 %v47
  %v134 = vpop.f32.mrf.mxu0
  %v135 = vadd.f32 0.0, %v134
  %136 = vmatmul.f32.gmra.mxu0 %v48
  %v137 = vpop.f32.mrf.mxu0
  %v138 = vadd.f32 0.0, %v137
  %139 = vmatmul.f32.gmra.mxu0 %v49
  %v140 = vpop.f32.mrf.mxu0
  %v141 = vadd.f32 0.0, %v140
  %142 = vmatmul.f32.gmra.mxu0 %v50
  %v143 = vpop.f32.mrf.mxu0
  %v144 = vadd.f32 0.0, %v143
  %145 = vmatmul.f32.gmra.mxu0 %v51
  %v146 = vpop.f32.mrf.mxu0
  %v147 = vadd.f32 0.0, %v146
  %148 = vmatmul.f32.gmra.mxu0 %v52
  %v149 = vpop.f32.mrf.mxu0
  %v150 = vadd.f32 0.0, %v149
  %151 = vmatmul.f32.gmra.mxu0 %v53
  %v152 = vpop.f32.mrf.mxu0
  %v153 = vadd.f32 0.0, %v152
  %154 = vmatmul.f32.gmra.mxu0 %v54
  %v155 = vpop.f32.mrf.mxu0
  %v156 = vadd.f32 0.0, %v155
  %157 = vmatmul.f32.gmra.mxu0 %v55
  %v158 = vpop.f32.mrf.mxu0
  %v159 = vadd.f32 0.0, %v158
  %160 = vmatmul.f32.gmra.mxu0 %v56
  %v161 = vpop.f32.mrf.mxu0
  %v162 = vadd.f32 0.0, %v161
  %163 = vmatmul.f32.gmra.mxu0 %v57
  %v164 = vpop.f32.mrf.mxu0
  %v165 = vadd.f32 0.0, %v164
  %166 = vmatmul.f32.gmra.mxu0 %v58
  %v167 = vpop.f32.mrf.mxu0
  %v168 = vadd.f32 0.0, %v167
  %169 = vmatmul.f32.gmra.mxu0 %v59
  %v170 = vpop.f32.mrf.mxu0
  %v171 = vadd.f32 0.0, %v170
  %172 = vmatmul.f32.gmra.mxu0 %v60
  %v173 = vpop.f32.mrf.mxu0
  %v174 = vadd.f32 0.0, %v173
  %175 = vmatmul.f32.gmra.mxu0 %v61
  %v176 = vpop.f32.mrf.mxu0
  %v177 = vadd.f32 0.0, %v176
  %178 = vmatmul.f32.gmra.mxu0 %v62
  %v179 = vpop.f32.mrf.mxu0
  %v180 = vadd.f32 0.0, %v179
  %181 = vmatmul.f32.gmra.mxu0 %v63
  %v182 = vpop.f32.mrf.mxu0
  %v183 = vadd.f32 0.0, %v182
  %184 = vmatmul.f32.gmra.mxu0 %v64
  %v185 = vpop.f32.mrf.mxu0
  %v186 = vadd.f32 0.0, %v185
  %187 = vmatmul.f32.gmra.mxu0 %v65
  %v188 = vpop.f32.mrf.mxu0
  %v189 = vadd.f32 0.0, %v188
  %190 = vdwg.mxu0
  %s191 = scalar_lea.vmem %s0, 288
  %v192 = vld [vmem:[%s191] sm:$0xff]
  %v193 = vld [vmem:[%s191 + $0x8] sm:$0xff]
  %v194 = vld [vmem:[%s191 + $0x10] sm:$0xff]
  %v195 = vld [vmem:[%s191 + $0x18] sm:$0xff]
  %v196 = vld [vmem:[%s191 + $0x20] sm:$0xff]
  %v197 = vld [vmem:[%s191 + $0x28] sm:$0xff]
  %v198 = vld [vmem:[%s191 + $0x30] sm:$0xff]
  %v199 = vld [vmem:[%s191 + $0x38] sm:$0xff]
  %v200 = vld [vmem:[%s191 + $0x40] sm:$0xff]
  %v201 = vld [vmem:[%s191 + $0x48] sm:$0xff]
  %v202 = vld [vmem:[%s191 + $0x50] sm:$0xff]
  %v203 = vld [vmem:[%s191 + $0x58] sm:$0xff]
  %v204 = vld [vmem:[%s191 + $0x60] sm:$0xff]
  %v205 = vld [vmem:[%s191 + $0x68] sm:$0xff]
  %v206 = vld [vmem:[%s191 + $0x70] sm:$0xff]
  %v207 = vld [vmem:[%s191 + $0x78] sm:$0xff]
  %v208 = vld [vmem:[%s191 + $0x80] sm:$0xff]
  %v209 = vld [vmem:[%s191 + $0x88] sm:$0xff]
  %v210 = vld [vmem:[%s191 + $0x90] sm:$0xff]
  %v211 = vld [vmem:[%s191 + $0x98] sm:$0xff]
  %v212 = vld [vmem:[%s191 + $0xa0] sm:$0xff]
  %v213 = vld [vmem:[%s191 + $0xa8] sm:$0xff]
  %v214 = vld [vmem:[%s191 + $0xb0] sm:$0xff]
  %v215 = vld [vmem:[%s191 + $0xb8] sm:$0xff]
  %v216 = vld [vmem:[%s191 + $0xc0] sm:$0xff]
  %v217 = vld [vmem:[%s191 + $0xc8] sm:$0xff]
  %v218 = vld [vmem:[%s191 + $0xd0] sm:$0xff]
  %v219 = vld [vmem:[%s191 + $0xd8] sm:$0xff]
  %v220 = vld [vmem:[%s191 + $0xe0] sm:$0xff]
  %v221 = vld [vmem:[%s191 + $0xe8] sm:$0xff]
  %v222 = vld [vmem:[%s191 + $0xf0] sm:$0xff]
  %v223 = vld [vmem:[%s191 + $0xf8] sm:$0xff]
  %v224 = vld [vmem:[%s191 + $0x100] sm:$0xff]
  %v225 = vld [vmem:[%s191 + $0x108] sm:$0xff]
  %v226 = vld [vmem:[%s191 + $0x110] sm:$0xff]
  %v227 = vld [vmem:[%s191 + $0x118] sm:$0xff]
  %228 = vmatpush.msra.mxu0 %v29
  %229 = vmatpush.msra.mxu0 %v28
  %230 = vmatpush.msra.mxu0 %v27
  %231 = vmatpush.msra.mxu0 %v26
  %232 = vmatpush.msra.mxu0 %v25
  %233 = vmatpush.msra.mxu0 %v24
  %234 = vmatpush.msra.mxu0 %v23
  %235 = vmatpush.msra.mxu0 %v22
  %236 = vmatpush.msra.mxu0 %v21
  %237 = vmatpush.msra.mxu0 %v20
  %238 = vmatpush.msra.mxu0 %v19
  %239 = vmatpush.msra.mxu0 %v18
  %240 = vmatpush.msra.mxu0 %v17
  %241 = vmatpush.msra.mxu0 %v16
  %242 = vmatpush.msra.mxu0 %v15
  %243 = vmatpush.msra.mxu0 %v14
  %244 = vmatmul.f32.gmra.mxu0 %v192
  %v245 = vpop.f32.mrf.mxu0
  %v246 = vadd.f32 0.0, %v245
  %247 = vmatmul.f32.gmra.mxu0 %v193
  %v248 = vpop.f32.mrf.mxu0
  %v249 = vadd.f32 0.0, %v248
  %250 = vmatmul.f32.gmra.mxu0 %v194
  %v251 = vpop.f32.mrf.mxu0
  %v252 = vadd.f32 0.0, %v251
  %253 = vmatmul.f32.gmra.mxu0 %v195
  %v254 = vpop.f32.mrf.mxu0
  %v255 = vadd.f32 0.0, %v254
  %256 = vmatmul.f32.gmra.mxu0 %v196
  %v257 = vpop.f32.mrf.mxu0
  %v258 = vadd.f32 0.0, %v257
  %259 = vmatmul.f32.gmra.mxu0 %v197
  %v260 = vpop.f32.mrf.mxu0
  %v261 = vadd.f32 0.0, %v260
  %262 = vmatmul.f32.gmra.mxu0 %v198
  %v263 = vpop.f32.mrf.mxu0
  %v264 = vadd.f32 0.0, %v263
  %265 = vmatmul.f32.gmra.mxu0 %v199
  %v266 = vpop.f32.mrf.mxu0
  %v267 = vadd.f32 0.0, %v266
  %268 = vmatmul.f32.gmra.mxu0 %v200
  %v269 = vpop.f32.mrf.mxu0
  %v270 = vadd.f32 0.0, %v269
  %271 = vmatmul.f32.gmra.mxu0 %v201
  %v272 = vpop.f32.mrf.mxu0
  %v273 = vadd.f32 0.0, %v272
  %274 = vmatmul.f32.gmra.mxu0 %v202
  %v275 = vpop.f32.mrf.mxu0
  %v276 = vadd.f32 0.0, %v275
  %277 = vmatmul.f32.gmra.mxu0 %v203
  %v278 = vpop.f32.mrf.mxu0
  %v279 = vadd.f32 0.0, %v278
  %280 = vmatmul.f32.gmra.mxu0 %v204
  %v281 = vpop.f32.mrf.mxu0
  %v282 = vadd.f32 0.0, %v281
  %283 = vmatmul.f32.gmra.mxu0 %v205
  %v284 = vpop.f32.mrf.mxu0
  %v285 = vadd.f32 0.0, %v284
  %286 = vmatmul.f32.gmra.mxu0 %v206
  %v287 = vpop.f32.mrf.mxu0
  %v288 = vadd.f32 0.0, %v287
  %289 = vmatmul.f32.gmra.mxu0 %v207
  %v290 = vpop.f32.mrf.mxu0
  %v291 = vadd.f32 0.0, %v290
  %292 = vmatmul.f32.gmra.mxu0 %v208
  %v293 = vpop.f32.mrf.mxu0
  %v294 = vadd.f32 0.0, %v293
  %295 = vmatmul.f32.gmra.mxu0 %v209
  %v296 = vpop.f32.mrf.mxu0
  %v297 = vadd.f32 0.0, %v296
  %298 = vmatmul.f32.gmra.mxu0 %v210
  %v299 = vpop.f32.mrf.mxu0
  %v300 = vadd.f32 0.0, %v299
  %301 = vmatmul.f32.gmra.mxu0 %v211
  %v302 = vpop.f32.mrf.mxu0
  %v303 = vadd.f32 0.0, %v302
  %304 = vmatmul.f32.gmra.mxu0 %v212
  %v305 = vpop.f32.mrf.mxu0
  %v306 = vadd.f32 0.0, %v305
  %307 = vmatmul.f32.gmra.mxu0 %v213
  %v308 = vpop.f32.mrf.mxu0
  %v309 = vadd.f32 0.0, %v308
  %310 = vmatmul.f32.gmra.mxu0 %v214
  %v311 = vpop.f32.mrf.mxu0
  %v312 = vadd.f32 0.0, %v311
  %313 = vmatmul.f32.gmra.mxu0 %v215
  %v314 = vpop.f32.mrf.mxu0
  %v315 = vadd.f32 0.0, %v314
  %316 = vmatmul.f32.gmra.mxu0 %v216
  %v317 = vpop.f32.mrf.mxu0
  %v318 = vadd.f32 0.0, %v317
  %319 = vmatmul.f32.gmra.mxu0 %v217
  %v320 = vpop.f32.mrf.mxu0
  %v321 = vadd.f32 0.0, %v320
  %322 = vmatmul.f32.gmra.mxu0 %v218
  %v323 = vpop.f32.mrf.mxu0
  %v324 = vadd.f32 0.0, %v323
  %325 = vmatmul.f32.gmra.mxu0 %v219
  %v326 = vpop.f32.mrf.mxu0
  %v327 = vadd.f32 0.0, %v326
  %328 = vmatmul.f32.gmra.mxu0 %v220
  %v329 = vpop.f32.mrf.mxu0
  %v330 = vadd.f32 0.0, %v329
  %331 = vmatmul.f32.gmra.mxu0 %v221
  %v332 = vpop.f32.mrf.mxu0
  %v333 = vadd.f32 0.0, %v332
  %334 = vmatmul.f32.gmra.mxu0 %v222
  %v335 = vpop.f32.mrf.mxu0
  %v336 = vadd.f32 0.0, %v335
  %337 = vmatmul.f32.gmra.mxu0 %v223
  %v338 = vpop.f32.mrf.mxu0
  %v339 = vadd.f32 0.0, %v338
  %340 = vmatmul.f32.gmra.mxu0 %v224
  %v341 = vpop.f32.mrf.mxu0
  %v342 = vadd.f32 0.0, %v341
  %343 = vmatmul.f32.gmra.mxu0 %v225
  %v344 = vpop.f32.mrf.mxu0
  %v345 = vadd.f32 0.0, %v344
  %346 = vmatmul.f32.gmra.mxu0 %v226
  %v347 = vpop.f32.mrf.mxu0
  %v348 = vadd.f32 0.0, %v347
  %349 = vmatmul.f32.gmra.mxu0 %v227
  %v350 = vpop.f32.mrf.mxu0
  %v351 = vadd.f32 0.0, %v350
  %352 = vdwg.mxu0
  %v353 = vmax.f32 %v84, %v246
  %v354 = vmax.f32 %v87, %v249
  %v355 = vmax.f32 %v90, %v252
  %v356 = vmax.f32 %v93, %v255
  %v357 = vmax.f32 %v96, %v258
  %v358 = vmax.f32 %v99, %v261
  %v359 = vmax.f32 %v102, %v264
  %v360 = vmax.f32 %v105, %v267
  %v361 = vmax.f32 %v108, %v270
  %v362 = vmax.f32 %v111, %v273
  %v363 = vmax.f32 %v114, %v276
  %v364 = vmax.f32 %v117, %v279
  %v365 = vmax.f32 %v120, %v282
  %v366 = vmax.f32 %v123, %v285
  %v367 = vmax.f32 %v126, %v288
  %v368 = vmax.f32 %v129, %v291
  %v369 = vmax.f32 %v132, %v294
  %v370 = vmax.f32 %v135, %v297
  %v371 = vmax.f32 %v138, %v300
  %v372 = vmax.f32 %v141, %v303
  %v373 = vmax.f32 %v144, %v306
  %v374 = vmax.f32 %v147, %v309
  %v375 = vmax.f32 %v150, %v312
  %v376 = vmax.f32 %v153, %v315
  %v377 = vmax.f32 %v156, %v318
  %v378 = vmax.f32 %v159, %v321
  %v379 = vmax.f32 %v162, %v324
  %v380 = vmax.f32 %v165, %v327
  %v381 = vmax.f32 %v168, %v330
  %v382 = vmax.f32 %v171, %v333
  %v383 = vmax.f32 %v174, %v336
  %v384 = vmax.f32 %v177, %v339
  %v385 = vmax.f32 %v180, %v342
  %v386 = vmax.f32 %v183, %v345
  %v387 = vmax.f32 %v186, %v348
  %v388 = vmax.f32 %v189, %v351
  %s389 = scalar_lea.vmem %s0, 576
  %v390 = vld [vmem:[%s389] sm:$0xff]
  %v391 = vld [vmem:[%s389 + $0x8] sm:$0xff]
  %v392 = vld [vmem:[%s389 + $0x10] sm:$0xff]
  %v393 = vld [vmem:[%s389 + $0x18] sm:$0xff]
  %v394 = vld [vmem:[%s389 + $0x20] sm:$0xff]
  %v395 = vld [vmem:[%s389 + $0x28] sm:$0xff]
  %v396 = vld [vmem:[%s389 + $0x30] sm:$0xff]
  %v397 = vld [vmem:[%s389 + $0x38] sm:$0xff]
  %v398 = vld [vmem:[%s389 + $0x40] sm:$0xff]
  %v399 = vld [vmem:[%s389 + $0x48] sm:$0xff]
  %v400 = vld [vmem:[%s389 + $0x50] sm:$0xff]
  %v401 = vld [vmem:[%s389 + $0x58] sm:$0xff]
  %v402 = vld [vmem:[%s389 + $0x60] sm:$0xff]
  %v403 = vld [vmem:[%s389 + $0x68] sm:$0xff]
  %v404 = vld [vmem:[%s389 + $0x70] sm:$0xff]
  %v405 = vld [vmem:[%s389 + $0x78] sm:$0xff]
  %v406 = vld [vmem:[%s389 + $0x80] sm:$0xff]
  %v407 = vld [vmem:[%s389 + $0x88] sm:$0xff]
  %v408 = vld [vmem:[%s389 + $0x90] sm:$0xff]
  %v409 = vld [vmem:[%s389 + $0x98] sm:$0xff]
  %v410 = vld [vmem:[%s389 + $0xa0] sm:$0xff]
  %v411 = vld [vmem:[%s389 + $0xa8] sm:$0xff]
  %v412 = vld [vmem:[%s389 + $0xb0] sm:$0xff]
  %v413 = vld [vmem:[%s389 + $0xb8] sm:$0xff]
  %v414 = vld [vmem:[%s389 + $0xc0] sm:$0xff]
  %v415 = vld [vmem:[%s389 + $0xc8] sm:$0xff]
  %v416 = vld [vmem:[%s389 + $0xd0] sm:$0xff]
  %v417 = vld [vmem:[%s389 + $0xd8] sm:$0xff]
  %v418 = vld [vmem:[%s389 + $0xe0] sm:$0xff]
  %v419 = vld [vmem:[%s389 + $0xe8] sm:$0xff]
  %v420 = vld [vmem:[%s389 + $0xf0] sm:$0xff]
  %v421 = vld [vmem:[%s389 + $0xf8] sm:$0xff]
  %v422 = vld [vmem:[%s389 + $0x100] sm:$0xff]
  %v423 = vld [vmem:[%s389 + $0x108] sm:$0xff]
  %v424 = vld [vmem:[%s389 + $0x110] sm:$0xff]
  %v425 = vld [vmem:[%s389 + $0x118] sm:$0xff]
  %426 = vmatpush.msra.mxu0 %v29
  %427 = vmatpush.msra.mxu0 %v28
  %428 = vmatpush.msra.mxu0 %v27
  %429 = vmatpush.msra.mxu0 %v26
  %430 = vmatpush.msra.mxu0 %v25
  %431 = vmatpush.msra.mxu0 %v24
  %432 = vmatpush.msra.mxu0 %v23
  %433 = vmatpush.msra.mxu0 %v22
  %434 = vmatpush.msra.mxu0 %v21
  %435 = vmatpush.msra.mxu0 %v20
  %436 = vmatpush.msra.mxu0 %v19
  %437 = vmatpush.msra.mxu0 %v18
  %438 = vmatpush.msra.mxu0 %v17
  %439 = vmatpush.msra.mxu0 %v16
  %440 = vmatpush.msra.mxu0 %v15
  %441 = vmatpush.msra.mxu0 %v14
  %442 = vmatmul.f32.gmra.mxu0 %v390
  %v443 = vpop.f32.mrf.mxu0
  %v444 = vadd.f32 0.0, %v443
  %445 = vmatmul.f32.gmra.mxu0 %v391
  %v446 = vpop.f32.mrf.mxu0
  %v447 = vadd.f32 0.0, %v446
  %448 = vmatmul.f32.gmra.mxu0 %v392
  %v449 = vpop.f32.mrf.mxu0
  %v450 = vadd.f32 0.0, %v449
  %451 = vmatmul.f32.gmra.mxu0 %v393
  %v452 = vpop.f32.mrf.mxu0
  %v453 = vadd.f32 0.0, %v452
  %454 = vmatmul.f32.gmra.mxu0 %v394
  %v455 = vpop.f32.mrf.mxu0
  %v456 = vadd.f32 0.0, %v455
  %457 = vmatmul.f32.gmra.mxu0 %v395
  %v458 = vpop.f32.mrf.mxu0
  %v459 = vadd.f32 0.0, %v458
  %460 = vmatmul.f32.gmra.mxu0 %v396
  %v461 = vpop.f32.mrf.mxu0
  %v462 = vadd.f32 0.0, %v461
  %463 = vmatmul.f32.gmra.mxu0 %v397
  %v464 = vpop.f32.mrf.mxu0
  %v465 = vadd.f32 0.0, %v464
  %466 = vmatmul.f32.gmra.mxu0 %v398
  %v467 = vpop.f32.mrf.mxu0
  %v468 = vadd.f32 0.0, %v467
  %469 = vmatmul.f32.gmra.mxu0 %v399
  %v470 = vpop.f32.mrf.mxu0
  %v471 = vadd.f32 0.0, %v470
  %472 = vmatmul.f32.gmra.mxu0 %v400
  %v473 = vpop.f32.mrf.mxu0
  %v474 = vadd.f32 0.0, %v473
  %475 = vmatmul.f32.gmra.mxu0 %v401
  %v476 = vpop.f32.mrf.mxu0
  %v477 = vadd.f32 0.0, %v476
  %478 = vmatmul.f32.gmra.mxu0 %v402
  %v479 = vpop.f32.mrf.mxu0
  %v480 = vadd.f32 0.0, %v479
  %481 = vmatmul.f32.gmra.mxu0 %v403
  %v482 = vpop.f32.mrf.mxu0
  %v483 = vadd.f32 0.0, %v482
  %484 = vmatmul.f32.gmra.mxu0 %v404
  %v485 = vpop.f32.mrf.mxu0
  %v486 = vadd.f32 0.0, %v485
  %487 = vmatmul.f32.gmra.mxu0 %v405
  %v488 = vpop.f32.mrf.mxu0
  %v489 = vadd.f32 0.0, %v488
  %490 = vmatmul.f32.gmra.mxu0 %v406
  %v491 = vpop.f32.mrf.mxu0
  %v492 = vadd.f32 0.0, %v491
  %493 = vmatmul.f32.gmra.mxu0 %v407
  %v494 = vpop.f32.mrf.mxu0
  %v495 = vadd.f32 0.0, %v494
  %496 = vmatmul.f32.gmra.mxu0 %v408
  %v497 = vpop.f32.mrf.mxu0
  %v498 = vadd.f32 0.0, %v497
  %499 = vmatmul.f32.gmra.mxu0 %v409
  %v500 = vpop.f32.mrf.mxu0
  %v501 = vadd.f32 0.0, %v500
  %502 = vmatmul.f32.gmra.mxu0 %v410
  %v503 = vpop.f32.mrf.mxu0
  %v504 = vadd.f32 0.0, %v503
  %505 = vmatmul.f32.gmra.mxu0 %v411
  %v506 = vpop.f32.mrf.mxu0
  %v507 = vadd.f32 0.0, %v506
  %508 = vmatmul.f32.gmra.mxu0 %v412
  %v509 = vpop.f32.mrf.mxu0
  %v510 = vadd.f32 0.0, %v509
  %511 = vmatmul.f32.gmra.mxu0 %v413
  %v512 = vpop.f32.mrf.mxu0
  %v513 = vadd.f32 0.0, %v512
  %514 = vmatmul.f32.gmra.mxu0 %v414
  %v515 = vpop.f32.mrf.mxu0
  %v516 = vadd.f32 0.0, %v515
  %517 = vmatmul.f32.gmra.mxu0 %v415
  %v518 = vpop.f32.mrf.mxu0
  %v519 = vadd.f32 0.0, %v518
  %520 = vmatmul.f32.gmra.mxu0 %v416
  %v521 = vpop.f32.mrf.mxu0
  %v522 = vadd.f32 0.0, %v521
  %523 = vmatmul.f32.gmra.mxu0 %v417
  %v524 = vpop.f32.mrf.mxu0
  %v525 = vadd.f32 0.0, %v524
  %526 = vmatmul.f32.gmra.mxu0 %v418
  %v527 = vpop.f32.mrf.mxu0
  %v528 = vadd.f32 0.0, %v527
  %529 = vmatmul.f32.gmra.mxu0 %v419
  %v530 = vpop.f32.mrf.mxu0
  %v531 = vadd.f32 0.0, %v530
  %532 = vmatmul.f32.gmra.mxu0 %v420
  %v533 = vpop.f32.mrf.mxu0
  %v534 = vadd.f32 0.0, %v533
  %535 = vmatmul.f32.gmra.mxu0 %v421
  %v536 = vpop.f32.mrf.mxu0
  %v537 = vadd.f32 0.0, %v536
  %538 = vmatmul.f32.gmra.mxu0 %v422
  %v539 = vpop.f32.mrf.mxu0
  %v540 = vadd.f32 0.0, %v539
  %541 = vmatmul.f32.gmra.mxu0 %v423
  %v542 = vpop.f32.mrf.mxu0
  %v543 = vadd.f32 0.0, %v542
  %544 = vmatmul.f32.gmra.mxu0 %v424
  %v545 = vpop.f32.mrf.mxu0
  %v546 = vadd.f32 0.0, %v545
  %547 = vmatmul.f32.gmra.mxu0 %v425
  %v548 = vpop.f32.mrf.mxu0
  %v549 = vadd.f32 0.0, %v548
  %550 = vdwg.mxu0
  %v551 = vmax.f32 %v353, %v444
  %v552 = vmax.f32 %v354, %v447
  %v553 = vmax.f32 %v355, %v450
  %v554 = vmax.f32 %v356, %v453
  %v555 = vmax.f32 %v357, %v456
  %v556 = vmax.f32 %v358, %v459
  %v557 = vmax.f32 %v359, %v462
  %v558 = vmax.f32 %v360, %v465
  %v559 = vmax.f32 %v361, %v468
  %v560 = vmax.f32 %v362, %v471
  %v561 = vmax.f32 %v363, %v474
  %v562 = vmax.f32 %v364, %v477
  %v563 = vmax.f32 %v365, %v480
  %v564 = vmax.f32 %v366, %v483
  %v565 = vmax.f32 %v367, %v486
  %v566 = vmax.f32 %v368, %v489
  %v567 = vmax.f32 %v369, %v492
  %v568 = vmax.f32 %v370, %v495
  %v569 = vmax.f32 %v371, %v498
  %v570 = vmax.f32 %v372, %v501
  %v571 = vmax.f32 %v373, %v504
  %v572 = vmax.f32 %v374, %v507
  %v573 = vmax.f32 %v375, %v510
  %v574 = vmax.f32 %v376, %v513
  %v575 = vmax.f32 %v377, %v516
  %v576 = vmax.f32 %v378, %v519
  %v577 = vmax.f32 %v379, %v522
  %v578 = vmax.f32 %v380, %v525
  %v579 = vmax.f32 %v381, %v528
  %v580 = vmax.f32 %v382, %v531
  %v581 = vmax.f32 %v383, %v534
  %v582 = vmax.f32 %v384, %v537
  %v583 = vmax.f32 %v385, %v540
  %v584 = vmax.f32 %v386, %v543
  %v585 = vmax.f32 %v387, %v546
  %v586 = vmax.f32 %v388, %v549
  %s587 = scalar_lea.vmem %s0, 864
  %v588 = vld [vmem:[%s587] sm:$0xff]
  %v589 = vld [vmem:[%s587 + $0x8] sm:$0xff]
  %v590 = vld [vmem:[%s587 + $0x10] sm:$0xff]
  %v591 = vld [vmem:[%s587 + $0x18] sm:$0xff]
  %v592 = vld [vmem:[%s587 + $0x20] sm:$0xff]
  %v593 = vld [vmem:[%s587 + $0x28] sm:$0xff]
  %v594 = vld [vmem:[%s587 + $0x30] sm:$0xff]
  %v595 = vld [vmem:[%s587 + $0x38] sm:$0xff]
  %v596 = vld [vmem:[%s587 + $0x40] sm:$0xff]
  %v597 = vld [vmem:[%s587 + $0x48] sm:$0xff]
  %v598 = vld [vmem:[%s587 + $0x50] sm:$0xff]
  %v599 = vld [vmem:[%s587 + $0x58] sm:$0xff]
  %v600 = vld [vmem:[%s587 + $0x60] sm:$0xff]
  %v601 = vld [vmem:[%s587 + $0x68] sm:$0xff]
  %v602 = vld [vmem:[%s587 + $0x70] sm:$0xff]
  %v603 = vld [vmem:[%s587 + $0x78] sm:$0xff]
  %v604 = vld [vmem:[%s587 + $0x80] sm:$0xff]
  %v605 = vld [vmem:[%s587 + $0x88] sm:$0xff]
  %v606 = vld [vmem:[%s587 + $0x90] sm:$0xff]
  %v607 = vld [vmem:[%s587 + $0x98] sm:$0xff]
  %v608 = vld [vmem:[%s587 + $0xa0] sm:$0xff]
  %v609 = vld [vmem:[%s587 + $0xa8] sm:$0xff]
  %v610 = vld [vmem:[%s587 + $0xb0] sm:$0xff]
  %v611 = vld [vmem:[%s587 + $0xb8] sm:$0xff]
  %v612 = vld [vmem:[%s587 + $0xc0] sm:$0xff]
  %v613 = vld [vmem:[%s587 + $0xc8] sm:$0xff]
  %v614 = vld [vmem:[%s587 + $0xd0] sm:$0xff]
  %v615 = vld [vmem:[%s587 + $0xd8] sm:$0xff]
  %v616 = vld [vmem:[%s587 + $0xe0] sm:$0xff]
  %v617 = vld [vmem:[%s587 + $0xe8] sm:$0xff]
  %v618 = vld [vmem:[%s587 + $0xf0] sm:$0xff]
  %v619 = vld [vmem:[%s587 + $0xf8] sm:$0xff]
  %v620 = vld [vmem:[%s587 + $0x100] sm:$0xff]
  %v621 = vld [vmem:[%s587 + $0x108] sm:$0xff]
  %v622 = vld [vmem:[%s587 + $0x110] sm:$0xff]
  %v623 = vld [vmem:[%s587 + $0x118] sm:$0xff]
  %624 = vmatpush.msra.mxu0 %v29
  %625 = vmatpush.msra.mxu0 %v28
  %626 = vmatpush.msra.mxu0 %v27
  %627 = vmatpush.msra.mxu0 %v26
  %628 = vmatpush.msra.mxu0 %v25
  %629 = vmatpush.msra.mxu0 %v24
  %630 = vmatpush.msra.mxu0 %v23
  %631 = vmatpush.msra.mxu0 %v22
  %632 = vmatpush.msra.mxu0 %v21
  %633 = vmatpush.msra.mxu0 %v20
  %634 = vmatpush.msra.mxu0 %v19
  %635 = vmatpush.msra.mxu0 %v18
  %636 = vmatpush.msra.mxu0 %v17
  %637 = vmatpush.msra.mxu0 %v16
  %638 = vmatpush.msra.mxu0 %v15
  %639 = vmatpush.msra.mxu0 %v14
  %640 = vmatmul.f32.gmra.mxu0 %v588
  %v641 = vpop.f32.mrf.mxu0
  %v642 = vadd.f32 0.0, %v641
  %643 = vmatmul.f32.gmra.mxu0 %v589
  %v644 = vpop.f32.mrf.mxu0
  %v645 = vadd.f32 0.0, %v644
  %646 = vmatmul.f32.gmra.mxu0 %v590
  %v647 = vpop.f32.mrf.mxu0
  %v648 = vadd.f32 0.0, %v647
  %649 = vmatmul.f32.gmra.mxu0 %v591
  %v650 = vpop.f32.mrf.mxu0
  %v651 = vadd.f32 0.0, %v650
  %652 = vmatmul.f32.gmra.mxu0 %v592
  %v653 = vpop.f32.mrf.mxu0
  %v654 = vadd.f32 0.0, %v653
  %655 = vmatmul.f32.gmra.mxu0 %v593
  %v656 = vpop.f32.mrf.mxu0
  %v657 = vadd.f32 0.0, %v656
  %658 = vmatmul.f32.gmra.mxu0 %v594
  %v659 = vpop.f32.mrf.mxu0
  %v660 = vadd.f32 0.0, %v659
  %661 = vmatmul.f32.gmra.mxu0 %v595
  %v662 = vpop.f32.mrf.mxu0
  %v663 = vadd.f32 0.0, %v662
  %664 = vmatmul.f32.gmra.mxu0 %v596
  %v665 = vpop.f32.mrf.mxu0
  %v666 = vadd.f32 0.0, %v665
  %667 = vmatmul.f32.gmra.mxu0 %v597
  %v668 = vpop.f32.mrf.mxu0
  %v669 = vadd.f32 0.0, %v668
  %670 = vmatmul.f32.gmra.mxu0 %v598
  %v671 = vpop.f32.mrf.mxu0
  %v672 = vadd.f32 0.0, %v671
  %673 = vmatmul.f32.gmra.mxu0 %v599
  %v674 = vpop.f32.mrf.mxu0
  %v675 = vadd.f32 0.0, %v674
  %676 = vmatmul.f32.gmra.mxu0 %v600
  %v677 = vpop.f32.mrf.mxu0
  %v678 = vadd.f32 0.0, %v677
  %679 = vmatmul.f32.gmra.mxu0 %v601
  %v680 = vpop.f32.mrf.mxu0
  %v681 = vadd.f32 0.0, %v680
  %682 = vmatmul.f32.gmra.mxu0 %v602
  %v683 = vpop.f32.mrf.mxu0
  %v684 = vadd.f32 0.0, %v683
  %685 = vmatmul.f32.gmra.mxu0 %v603
  %v686 = vpop.f32.mrf.mxu0
  %v687 = vadd.f32 0.0, %v686
  %688 = vmatmul.f32.gmra.mxu0 %v604
  %v689 = vpop.f32.mrf.mxu0
  %v690 = vadd.f32 0.0, %v689
  %691 = vmatmul.f32.gmra.mxu0 %v605
  %v692 = vpop.f32.mrf.mxu0
  %v693 = vadd.f32 0.0, %v692
  %694 = vmatmul.f32.gmra.mxu0 %v606
  %v695 = vpop.f32.mrf.mxu0
  %v696 = vadd.f32 0.0, %v695
  %697 = vmatmul.f32.gmra.mxu0 %v607
  %v698 = vpop.f32.mrf.mxu0
  %v699 = vadd.f32 0.0, %v698
  %700 = vmatmul.f32.gmra.mxu0 %v608
  %v701 = vpop.f32.mrf.mxu0
  %v702 = vadd.f32 0.0, %v701
  %703 = vmatmul.f32.gmra.mxu0 %v609
  %v704 = vpop.f32.mrf.mxu0
  %v705 = vadd.f32 0.0, %v704
  %706 = vmatmul.f32.gmra.mxu0 %v610
  %v707 = vpop.f32.mrf.mxu0
  %v708 = vadd.f32 0.0, %v707
  %709 = vmatmul.f32.gmra.mxu0 %v611
  %v710 = vpop.f32.mrf.mxu0
  %v711 = vadd.f32 0.0, %v710
  %712 = vmatmul.f32.gmra.mxu0 %v612
  %v713 = vpop.f32.mrf.mxu0
  %v714 = vadd.f32 0.0, %v713
  %715 = vmatmul.f32.gmra.mxu0 %v613
  %v716 = vpop.f32.mrf.mxu0
  %v717 = vadd.f32 0.0, %v716
  %718 = vmatmul.f32.gmra.mxu0 %v614
  %v719 = vpop.f32.mrf.mxu0
  %v720 = vadd.f32 0.0, %v719
  %721 = vmatmul.f32.gmra.mxu0 %v615
  %v722 = vpop.f32.mrf.mxu0
  %v723 = vadd.f32 0.0, %v722
  %724 = vmatmul.f32.gmra.mxu0 %v616
  %v725 = vpop.f32.mrf.mxu0
  %v726 = vadd.f32 0.0, %v725
  %727 = vmatmul.f32.gmra.mxu0 %v617
  %v728 = vpop.f32.mrf.mxu0
  %v729 = vadd.f32 0.0, %v728
  %730 = vmatmul.f32.gmra.mxu0 %v618
  %v731 = vpop.f32.mrf.mxu0
  %v732 = vadd.f32 0.0, %v731
  %733 = vmatmul.f32.gmra.mxu0 %v619
  %v734 = vpop.f32.mrf.mxu0
  %v735 = vadd.f32 0.0, %v734
  %736 = vmatmul.f32.gmra.mxu0 %v620
  %v737 = vpop.f32.mrf.mxu0
  %v738 = vadd.f32 0.0, %v737
  %739 = vmatmul.f32.gmra.mxu0 %v621
  %v740 = vpop.f32.mrf.mxu0
  %v741 = vadd.f32 0.0, %v740
  %742 = vmatmul.f32.gmra.mxu0 %v622
  %v743 = vpop.f32.mrf.mxu0
  %v744 = vadd.f32 0.0, %v743
  %745 = vmatmul.f32.gmra.mxu0 %v623
  %v746 = vpop.f32.mrf.mxu0
  %v747 = vadd.f32 0.0, %v746
  %748 = vdwg.mxu0
  %v749 = vmax.f32 %v551, %v642
  %v750 = vmax.f32 %v552, %v645
  %v751 = vmax.f32 %v553, %v648
  %v752 = vmax.f32 %v554, %v651
  %v753 = vmax.f32 %v555, %v654
  %v754 = vmax.f32 %v556, %v657
  %v755 = vmax.f32 %v557, %v660
  %v756 = vmax.f32 %v558, %v663
  %v757 = vmax.f32 %v559, %v666
  %v758 = vmax.f32 %v560, %v669
  %v759 = vmax.f32 %v561, %v672
  %v760 = vmax.f32 %v562, %v675
  %v761 = vmax.f32 %v563, %v678
  %v762 = vmax.f32 %v564, %v681
  %v763 = vmax.f32 %v565, %v684
  %v764 = vmax.f32 %v566, %v687
  %v765 = vmax.f32 %v567, %v690
  %v766 = vmax.f32 %v568, %v693
  %v767 = vmax.f32 %v569, %v696
  %v768 = vmax.f32 %v570, %v699
  %v769 = vmax.f32 %v571, %v702
  %v770 = vmax.f32 %v572, %v705
  %v771 = vmax.f32 %v573, %v708
  %v772 = vmax.f32 %v574, %v711
  %v773 = vmax.f32 %v575, %v714
  %v774 = vmax.f32 %v576, %v717
  %v775 = vmax.f32 %v577, %v720
  %v776 = vmax.f32 %v578, %v723
  %v777 = vmax.f32 %v579, %v726
  %v778 = vmax.f32 %v580, %v729
  %v779 = vmax.f32 %v581, %v732
  %v780 = vmax.f32 %v582, %v735
  %v781 = vmax.f32 %v583, %v738
  %v782 = vmax.f32 %v584, %v741
  %v783 = vmax.f32 %v585, %v744
  %v784 = vmax.f32 %v586, %v747
  %v785 = vld [vmem:[%s2] sm:$0x1]
  %v787 = vperm.slane %v785, 0
  %v789 = vadd.f32 %v749, %v787
  %v790 = vadd.f32 %v750, %v787
  %v791 = vadd.f32 %v751, %v787
  %v792 = vadd.f32 %v752, %v787
  %v793 = vadd.f32 %v753, %v787
  %v794 = vadd.f32 %v754, %v787
  %v795 = vadd.f32 %v755, %v787
  %v796 = vadd.f32 %v756, %v787
  %v797 = vadd.f32 %v757, %v787
  %v798 = vadd.f32 %v758, %v787
  %v799 = vadd.f32 %v759, %v787
  %v800 = vadd.f32 %v760, %v787
  %v801 = vadd.f32 %v761, %v787
  %v802 = vadd.f32 %v762, %v787
  %v803 = vadd.f32 %v763, %v787
  %v804 = vadd.f32 %v764, %v787
  %v805 = vadd.f32 %v765, %v787
  %v806 = vadd.f32 %v766, %v787
  %v807 = vadd.f32 %v767, %v787
  %v808 = vadd.f32 %v768, %v787
  %v809 = vadd.f32 %v769, %v787
  %v810 = vadd.f32 %v770, %v787
  %v811 = vadd.f32 %v771, %v787
  %v812 = vadd.f32 %v772, %v787
  %v813 = vadd.f32 %v773, %v787
  %v814 = vadd.f32 %v774, %v787
  %v815 = vadd.f32 %v775, %v787
  %v816 = vadd.f32 %v776, %v787
  %v817 = vadd.f32 %v777, %v787
  %v818 = vadd.f32 %v778, %v787
  %v819 = vadd.f32 %v779, %v787
  %v820 = vadd.f32 %v780, %v787
  %v821 = vadd.f32 %v781, %v787
  %v822 = vadd.f32 %v782, %v787
  %v823 = vadd.f32 %v783, %v787
  %v824 = vadd.f32 %v784, %v787
  %v825 = vmax.f32 %v789, 0.0
  %v826 = vmax.f32 %v790, 0.0
  %v827 = vmax.f32 %v791, 0.0
  %v828 = vmax.f32 %v792, 0.0
  %v829 = vmax.f32 %v793, 0.0
  %v830 = vmax.f32 %v794, 0.0
  %v831 = vmax.f32 %v795, 0.0
  %v832 = vmax.f32 %v796, 0.0
  %v833 = vmax.f32 %v797, 0.0
  %v834 = vmax.f32 %v798, 0.0
  %v835 = vmax.f32 %v799, 0.0
  %v836 = vmax.f32 %v800, 0.0
  %v837 = vmax.f32 %v801, 0.0
  %v838 = vmax.f32 %v802, 0.0
  %v839 = vmax.f32 %v803, 0.0
  %v840 = vmax.f32 %v804, 0.0
  %v841 = vmax.f32 %v805, 0.0
  %v842 = vmax.f32 %v806, 0.0
  %v843 = vmax.f32 %v807, 0.0
  %v844 = vmax.f32 %v808, 0.0
  %v845 = vmax.f32 %v809, 0.0
  %v846 = vmax.f32 %v810, 0.0
  %v847 = vmax.f32 %v811, 0.0
  %v848 = vmax.f32 %v812, 0.0
  %v849 = vmax.f32 %v813, 0.0
  %v850 = vmax.f32 %v814, 0.0
  %v851 = vmax.f32 %v815, 0.0
  %v852 = vmax.f32 %v816, 0.0
  %v853 = vmax.f32 %v817, 0.0
  %v854 = vmax.f32 %v818, 0.0
  %v855 = vmax.f32 %v819, 0.0
  %v856 = vmax.f32 %v820, 0.0
  %v857 = vmax.f32 %v821, 0.0
  %v858 = vmax.f32 %v822, 0.0
  %v859 = vmax.f32 %v823, 0.0
  %v860 = vmax.f32 %v824, 0.0
  %861 = vst [vmem:[%s3] sm:$0xff] %v825
  %862 = vst [vmem:[%s3 + $0x8] sm:$0xff] %v826
  %863 = vst [vmem:[%s3 + $0x10] sm:$0xff] %v827
  %864 = vst [vmem:[%s3 + $0x18] sm:$0xff] %v828
  %865 = vst [vmem:[%s3 + $0x20] sm:$0xff] %v829
  %866 = vst [vmem:[%s3 + $0x28] sm:$0xff] %v830
  %867 = vst [vmem:[%s3 + $0x30] sm:$0xff] %v831
  %868 = vst [vmem:[%s3 + $0x38] sm:$0xff] %v832
  %869 = vst [vmem:[%s3 + $0x40] sm:$0xff] %v833
  %870 = vst [vmem:[%s3 + $0x48] sm:$0xff] %v834
  %871 = vst [vmem:[%s3 + $0x50] sm:$0xff] %v835
  %872 = vst [vmem:[%s3 + $0x58] sm:$0xff] %v836
  %873 = vst [vmem:[%s3 + $0x60] sm:$0xff] %v837
  %874 = vst [vmem:[%s3 + $0x68] sm:$0xff] %v838
  %875 = vst [vmem:[%s3 + $0x70] sm:$0xff] %v839
  %876 = vst [vmem:[%s3 + $0x78] sm:$0xff] %v840
  %877 = vst [vmem:[%s3 + $0x80] sm:$0xff] %v841
  %878 = vst [vmem:[%s3 + $0x88] sm:$0xff] %v842
  %879 = vst [vmem:[%s3 + $0x90] sm:$0xff] %v843
  %880 = vst [vmem:[%s3 + $0x98] sm:$0xff] %v844
  %881 = vst [vmem:[%s3 + $0xa0] sm:$0xff] %v845
  %882 = vst [vmem:[%s3 + $0xa8] sm:$0xff] %v846
  %883 = vst [vmem:[%s3 + $0xb0] sm:$0xff] %v847
  %884 = vst [vmem:[%s3 + $0xb8] sm:$0xff] %v848
  %885 = vst [vmem:[%s3 + $0xc0] sm:$0xff] %v849
  %886 = vst [vmem:[%s3 + $0xc8] sm:$0xff] %v850
  %887 = vst [vmem:[%s3 + $0xd0] sm:$0xff] %v851
  %888 = vst [vmem:[%s3 + $0xd8] sm:$0xff] %v852
  %889 = vst [vmem:[%s3 + $0xe0] sm:$0xff] %v853
  %890 = vst [vmem:[%s3 + $0xe8] sm:$0xff] %v854
  %891 = vst [vmem:[%s3 + $0xf0] sm:$0xff] %v855
  %892 = vst [vmem:[%s3 + $0xf8] sm:$0xff] %v856
  %893 = vst [vmem:[%s3 + $0x100] sm:$0xff] %v857
  %894 = vst [vmem:[%s3 + $0x108] sm:$0xff] %v858
  %895 = vst [vmem:[%s3 + $0x110] sm:$0xff] %v859
  %896 = vst [vmem:[%s3 + $0x118] sm:$0xff] %v860
  // Predicated region
  $region14: #{net_forward.3} parent=0 // pred_check
    _
  $region15: #{net_forward.3} parent=0 // pred_check_branch
    %898 = sbr.rel (0) target = $region17
  $region16: #{net_forward.3} parent=0 // pred_region
    _
  $region17: #{net_forward.3} parent=0 // pred_fallthru
    _
  // Predicated region
  $region18: #{net_forward.3} parent=0 // pred_check
    _
  $region19: #{net_forward.3} parent=0 // pred_check_branch
    %900 = sbr.rel (0) target = $region21
  $region20: #{net_forward.3} parent=0 // pred_region
    _
  $region21: #{net_forward.3} parent=0 // pred_fallthru
    _

// kernel: net_forward.4
$region0: #{net_forward.4}
  #allocation0 [shape = 'u32[]', space=smem, size = 0x4, offset = 0x4, fixed_abs, tag = 'smem constant byte address 0x4 - core index']
  #allocation1 [shape = 'u32[72,128]{1,0:T(1,128)}', space=vmem, size = 0x9000, scoped, tag = 'internal scratch']
  %s0 = inlined_call_operand.vmem [shape: f32[4,32,256], index: 0, kind: input, shape index: {}]
  %s1 = inlined_call_operand.vmem [shape: f32[256,128], index: 1, kind: input, shape index: {}]
  %s2 = inlined_call_operand.vmem [shape: f32[1,128], index: 2, kind: input, shape index: {}]
  %s3 = inlined_call_operand.vmem [shape: f32[32,128], index: 3, kind: output, shape index: {}]
  %s4 = sld [smem:[#allocation0]]
  $region22: #{net_forward.4} parent=0
    _
  %s6 = ssub.s32 1, %s4
  %s7 = scalar_select 0, %s6, %s4
  // Predicated region
  $region2: #{net_forward.4} parent=0 // pred_check
    _
  $region3: #{net_forward.4} parent=0 // pred_check_branch
    %9 = sbr.rel (0) target = $region5
  $region4: #{net_forward.4} parent=0 // pred_region
    _
  $region5: #{net_forward.4} parent=0 // pred_fallthru
    _
  // Predicated region
  $region6: #{net_forward.4} parent=0 // pred_check
    _
  $region7: #{net_forward.4} parent=0 // pred_check_branch
    %11 = sbr.rel (0) target = $region9
  $region8: #{net_forward.4} parent=0 // pred_region
    _
  $region9: #{net_forward.4} parent=0 // pred_fallthru
    _
  // Predicated region
  $region10: #{net_forward.4} parent=0 // pred_check
    _
  $region11: #{net_forward.4} parent=0 // pred_check_branch
    %13 = sbr.rel (0) target = $region13
  $region12: #{net_forward.4} parent=0 // pred_region
    _
  $region13: #{net_forward.4} parent=0 // pred_fallthru
    _
  %v14 = vld [vmem:[%s1] sm:$0xff]
  %v15 = vld [vmem:[%s1 + $0x8] sm:$0xff]
  %v16 = vld [vmem:[%s1 + $0x10] sm:$0xff]
  %v17 = vld [vmem:[%s1 + $0x18] sm:$0xff]
  %v18 = vld [vmem:[%s1 + $0x20] sm:$0xff]
  %v19 = vld [vmem:[%s1 + $0x28] sm:$0xff]
  %v20 = vld [vmem:[%s1 + $0x30] sm:$0xff]
  %v21 = vld [vmem:[%s1 + $0x38] sm:$0xff]
  %v22 = vld [vmem:[%s1 + $0x40] sm:$0xff]
  %v23 = vld [vmem:[%s1 + $0x48] sm:$0xff]
  %v24 = vld [vmem:[%s1 + $0x50] sm:$0xff]
  %v25 = vld [vmem:[%s1 + $0x58] sm:$0xff]
  %v26 = vld [vmem:[%s1 + $0x60] sm:$0xff]
  %v27 = vld [vmem:[%s1 + $0x68] sm:$0xff]
  %v28 = vld [vmem:[%s1 + $0x70] sm:$0xff]
  %v29 = vld [vmem:[%s1 + $0x78] sm:$0xff]
  %v30 = vld [vmem:[%s1 + $0x80] sm:$0xff]
  %v31 = vld [vmem:[%s1 + $0x88] sm:$0xff]
  %v32 = vld [vmem:[%s1 + $0x90] sm:$0xff]
  %v33 = vld [vmem:[%s1 + $0x98] sm:$0xff]
  %v34 = vld [vmem:[%s1 + $0xa0] sm:$0xff]
  %v35 = vld [vmem:[%s1 + $0xa8] sm:$0xff]
  %v36 = vld [vmem:[%s1 + $0xb0] sm:$0xff]
  %v37 = vld [vmem:[%s1 + $0xb8] sm:$0xff]
  %v38 = vld [vmem:[%s1 + $0xc0] sm:$0xff]
  %v39 = vld [vmem:[%s1 + $0xc8] sm:$0xff]
  %v40 = vld [vmem:[%s1 + $0xd0] sm:$0xff]
  %v41 = vld [vmem:[%s1 + $0xd8] sm:$0xff]
  %v42 = vld [vmem:[%s1 + $0xe0] sm:$0xff]
  %v43 = vld [vmem:[%s1 + $0xe8] sm:$0xff]
  %v44 = vld [vmem:[%s1 + $0xf0] sm:$0xff]
  %v45 = vld [vmem:[%s1 + $0xf8] sm:$0xff]
  %v46 = vld [vmem:[%s0] sm:$0xff]
  %v47 = vld [vmem:[%s0 + $0x8] sm:$0xff]
  %v48 = vld [vmem:[%s0 + $0x10] sm:$0xff]
  %v49 = vld [vmem:[%s0 + $0x18] sm:$0xff]
  %v50 = vld [vmem:[%s0 + $0x20] sm:$0xff]
  %v51 = vld [vmem:[%s0 + $0x28] sm:$0xff]
  %v52 = vld [vmem:[%s0 + $0x30] sm:$0xff]
  %v53 = vld [vmem:[%s0 + $0x38] sm:$0xff]
  %54 = vmatpush.msra.mxu0 %v29
  %55 = vmatpush.msra.mxu0 %v28
  %56 = vmatpush.msra.mxu0 %v27
  %57 = vmatpush.msra.mxu0 %v26
  %58 = vmatpush.msra.mxu0 %v25
  %59 = vmatpush.msra.mxu0 %v24
  %60 = vmatpush.msra.mxu0 %v23
  %61 = vmatpush.msra.mxu0 %v22
  %62 = vmatpush.msra.mxu0 %v21
  %63 = vmatpush.msra.mxu0 %v20
  %64 = vmatpush.msra.mxu0 %v19
  %65 = vmatpush.msra.mxu0 %v18
  %66 = vmatpush.msra.mxu0 %v17
  %67 = vmatpush.msra.mxu0 %v16
  %68 = vmatpush.msra.mxu0 %v15
  %69 = vmatpush.msra.mxu0 %v14
  %70 = vmatmul.f32.gmra.mxu0 %v46
  %v71 = vpop.f32.mrf.mxu0
  %v72 = vadd.f32 0.0, %v71
  %73 = vmatmul.f32.gmra.mxu0 %v48
  %v74 = vpop.f32.mrf.mxu0
  %v75 = vadd.f32 0.0, %v74
  %76 = vmatmul.f32.gmra.mxu0 %v50
  %v77 = vpop.f32.mrf.mxu0
  %v78 = vadd.f32 0.0, %v77
  %79 = vmatmul.f32.gmra.mxu0 %v52
  %v80 = vpop.f32.mrf.mxu0
  %v81 = vadd.f32 0.0, %v80
  %82 = vdwg.mxu0
  %83 = vmatpush.msra.mxu0 %v45
  %84 = vmatpush.msra.mxu0 %v44
  %85 = vmatpush.msra.mxu0 %v43
  %86 = vmatpush.msra.mxu0 %v42
  %87 = vmatpush.msra.mxu0 %v41
  %88 = vmatpush.msra.mxu0 %v40
  %89 = vmatpush.msra.mxu0 %v39
  %90 = vmatpush.msra.mxu0 %v38
  %91 = vmatpush.msra.mxu0 %v37
  %92 = vmatpush.msra.mxu0 %v36
  %93 = vmatpush.msra.mxu0 %v35
  %94 = vmatpush.msra.mxu0 %v34
  %95 = vmatpush.msra.mxu0 %v33
  %96 = vmatpush.msra.mxu0 %v32
  %97 = vmatpush.msra.mxu0 %v31
  %98 = vmatpush.msra.mxu0 %v30
  %99 = vmatmul.f32.gmra.mxu0 %v47
  %v100 = vpop.f32.mrf.mxu0
  %v101 = vadd.f32 %v72, %v100
  %102 = vmatmul.f32.gmra.mxu0 %v49
  %v103 = vpop.f32.mrf.mxu0
  %v104 = vadd.f32 %v75, %v103
  %105 = vmatmul.f32.gmra.mxu0 %v51
  %v106 = vpop.f32.mrf.mxu0
  %v107 = vadd.f32 %v78, %v106
  %108 = vmatmul.f32.gmra.mxu0 %v53
  %v109 = vpop.f32.mrf.mxu0
  %v110 = vadd.f32 %v81, %v109
  %111 = vdwg.mxu0
  %s112 = scalar_lea.vmem %s0, 64
  %v113 = vld [vmem:[%s112] sm:$0xff]
  %v114 = vld [vmem:[%s112 + $0x8] sm:$0xff]
  %v115 = vld [vmem:[%s112 + $0x10] sm:$0xff]
  %v116 = vld [vmem:[%s112 + $0x18] sm:$0xff]
  %v117 = vld [vmem:[%s112 + $0x20] sm:$0xff]
  %v118 = vld [vmem:[%s112 + $0x28] sm:$0xff]
  %v119 = vld [vmem:[%s112 + $0x30] sm:$0xff]
  %v120 = vld [vmem:[%s112 + $0x38] sm:$0xff]
  %121 = vmatpush.msra.mxu0 %v29
  %122 = vmatpush.msra.mxu0 %v28
  %123 = vmatpush.msra.mxu0 %v27
  %124 = vmatpush.msra.mxu0 %v26
  %125 = vmatpush.msra.mxu0 %v25
  %126 = vmatpush.msra.mxu0 %v24
  %127 = vmatpush.msra.mxu0 %v23
  %128 = vmatpush.msra.mxu0 %v22
  %129 = vmatpush.msra.mxu0 %v21
  %130 = vmatpush.msra.mxu0 %v20
  %131 = vmatpush.msra.mxu0 %v19
  %132 = vmatpush.msra.mxu0 %v18
  %133 = vmatpush.msra.mxu0 %v17
  %134 = vmatpush.msra.mxu0 %v16
  %135 = vmatpush.msra.mxu0 %v15
  %136 = vmatpush.msra.mxu0 %v14
  %137 = vmatmul.f32.gmra.mxu0 %v113
  %v138 = vpop.f32.mrf.mxu0
  %v139 = vadd.f32 0.0, %v138
  %140 = vmatmul.f32.gmra.mxu0 %v115
  %v141 = vpop.f32.mrf.mxu0
  %v142 = vadd.f32 0.0, %v141
  %143 = vmatmul.f32.gmra.mxu0 %v117
  %v144 = vpop.f32.mrf.mxu0
  %v145 = vadd.f32 0.0, %v144
  %146 = vmatmul.f32.gmra.mxu0 %v119
  %v147 = vpop.f32.mrf.mxu0
  %v148 = vadd.f32 0.0, %v147
  %149 = vdwg.mxu0
  %150 = vmatpush.msra.mxu0 %v45
  %151 = vmatpush.msra.mxu0 %v44
  %152 = vmatpush.msra.mxu0 %v43
  %153 = vmatpush.msra.mxu0 %v42
  %154 = vmatpush.msra.mxu0 %v41
  %155 = vmatpush.msra.mxu0 %v40
  %156 = vmatpush.msra.mxu0 %v39
  %157 = vmatpush.msra.mxu0 %v38
  %158 = vmatpush.msra.mxu0 %v37
  %159 = vmatpush.msra.mxu0 %v36
  %160 = vmatpush.msra.mxu0 %v35
  %161 = vmatpush.msra.mxu0 %v34
  %162 = vmatpush.msra.mxu0 %v33
  %163 = vmatpush.msra.mxu0 %v32
  %164 = vmatpush.msra.mxu0 %v31
  %165 = vmatpush.msra.mxu0 %v30
  %166 = vmatmul.f32.gmra.mxu0 %v114
  %v167 = vpop.f32.mrf.mxu0
  %v168 = vadd.f32 %v139, %v167
  %169 = vmatmul.f32.gmra.mxu0 %v116
  %v170 = vpop.f32.mrf.mxu0
  %v171 = vadd.f32 %v142, %v170
  %172 = vmatmul.f32.gmra.mxu0 %v118
  %v173 = vpop.f32.mrf.mxu0
  %v174 = vadd.f32 %v145, %v173
  %175 = vmatmul.f32.gmra.mxu0 %v120
  %v176 = vpop.f32.mrf.mxu0
  %v177 = vadd.f32 %v148, %v176
  %178 = vdwg.mxu0
  %v179 = vmax.f32 %v101, %v168
  %v180 = vmax.f32 %v104, %v171
  %v181 = vmax.f32 %v107, %v174
  %v182 = vmax.f32 %v110, %v177
  %s183 = scalar_lea.vmem %s0, 128
  %v184 = vld [vmem:[%s183] sm:$0xff]
  %v185 = vld [vmem:[%s183 + $0x8] sm:$0xff]
  %v186 = vld [vmem:[%s183 + $0x10] sm:$0xff]
  %v187 = vld [vmem:[%s183 + $0x18] sm:$0xff]
  %v188 = vld [vmem:[%s183 + $0x20] sm:$0xff]
  %v189 = vld [vmem:[%s183 + $0x28] sm:$0xff]
  %v190 = vld [vmem:[%s183 + $0x30] sm:$0xff]
  %v191 = vld [vmem:[%s183 + $0x38] sm:$0xff]
  %192 = vmatpush.msra.mxu0 %v29
  %193 = vmatpush.msra.mxu0 %v28
  %194 = vmatpush.msra.mxu0 %v27
  %195 = vmatpush.msra.mxu0 %v26
  %196 = vmatpush.msra.mxu0 %v25
  %197 = vmatpush.msra.mxu0 %v24
  %198 = vmatpush.msra.mxu0 %v23
  %199 = vmatpush.msra.mxu0 %v22
  %200 = vmatpush.msra.mxu0 %v21
  %201 = vmatpush.msra.mxu0 %v20
  %202 = vmatpush.msra.mxu0 %v19
  %203 = vmatpush.msra.mxu0 %v18
  %204 = vmatpush.msra.mxu0 %v17
  %205 = vmatpush.msra.mxu0 %v16
  %206 = vmatpush.msra.mxu0 %v15
  %207 = vmatpush.msra.mxu0 %v14
  %208 = vmatmul.f32.gmra.mxu0 %v184
  %v209 = vpop.f32.mrf.mxu0
  %v210 = vadd.f32 0.0, %v209
  %211 = vmatmul.f32.gmra.mxu0 %v186
  %v212 = vpop.f32.mrf.mxu0
  %v213 = vadd.f32 0.0, %v212
  %214 = vmatmul.f32.gmra.mxu0 %v188
  %v215 = vpop.f32.mrf.mxu0
  %v216 = vadd.f32 0.0, %v215
  %217 = vmatmul.f32.gmra.mxu0 %v190
  %v218 = vpop.f32.mrf.mxu0
  %v219 = vadd.f32 0.0, %v218
  %220 = vdwg.mxu0
  %221 = vmatpush.msra.mxu0 %v45
  %222 = vmatpush.msra.mxu0 %v44
  %223 = vmatpush.msra.mxu0 %v43
  %224 = vmatpush.msra.mxu0 %v42
  %225 = vmatpush.msra.mxu0 %v41
  %226 = vmatpush.msra.mxu0 %v40
  %227 = vmatpush.msra.mxu0 %v39
  %228 = vmatpush.msra.mxu0 %v38
  %229 = vmatpush.msra.mxu0 %v37
  %230 = vmatpush.msra.mxu0 %v36
  %231 = vmatpush.msra.mxu0 %v35
  %232 = vmatpush.msra.mxu0 %v34
  %233 = vmatpush.msra.mxu0 %v33
  %234 = vmatpush.msra.mxu0 %v32
  %235 = vmatpush.msra.mxu0 %v31
  %236 = vmatpush.msra.mxu0 %v30
  %237 = vmatmul.f32.gmra.mxu0 %v185
  %v238 = vpop.f32.mrf.mxu0
  %v239 = vadd.f32 %v210, %v238
  %240 = vmatmul.f32.gmra.mxu0 %v187
  %v241 = vpop.f32.mrf.mxu0
  %v242 = vadd.f32 %v213, %v241
  %243 = vmatmul.f32.gmra.mxu0 %v189
  %v244 = vpop.f32.mrf.mxu0
  %v245 = vadd.f32 %v216, %v244
  %246 = vmatmul.f32.gmra.mxu0 %v191
  %v247 = vpop.f32.mrf.mxu0
  %v248 = vadd.f32 %v219, %v247
  %249 = vdwg.mxu0
  %v250 = vmax.f32 %v179, %v239
  %v251 = vmax.f32 %v180, %v242
  %v252 = vmax.f32 %v181, %v245
  %v253 = vmax.f32 %v182, %v248
  %s254 = scalar_lea.vmem %s0, 192
  %v255 = vld [vmem:[%s254] sm:$0xff]
  %v256 = vld [vmem:[%s254 + $0x8] sm:$0xff]
  %v257 = vld [vmem:[%s254 + $0x10] sm:$0xff]
  %v258 = vld [vmem:[%s254 + $0x18] sm:$0xff]
  %v259 = vld [vmem:[%s254 + $0x20] sm:$0xff]
  %v260 = vld [vmem:[%s254 + $0x28] sm:$0xff]
  %v261 = vld [vmem:[%s254 + $0x30] sm:$0xff]
  %v262 = vld [vmem:[%s254 + $0x38] sm:$0xff]
  %263 = vmatpush.msra.mxu0 %v29
  %264 = vmatpush.msra.mxu0 %v28
  %265 = vmatpush.msra.mxu0 %v27
  %266 = vmatpush.msra.mxu0 %v26
  %267 = vmatpush.msra.mxu0 %v25
  %268 = vmatpush.msra.mxu0 %v24
  %269 = vmatpush.msra.mxu0 %v23
  %270 = vmatpush.msra.mxu0 %v22
  %271 = vmatpush.msra.mxu0 %v21
  %272 = vmatpush.msra.mxu0 %v20
  %273 = vmatpush.msra.mxu0 %v19
  %274 = vmatpush.msra.mxu0 %v18
  %275 = vmatpush.msra.mxu0 %v17
  %276 = vmatpush.msra.mxu0 %v16
  %277 = vmatpush.msra.mxu0 %v15
  %278 = vmatpush.msra.mxu0 %v14
  %279 = vmatmul.f32.gmra.mxu0 %v255
  %v280 = vpop.f32.mrf.mxu0
  %v281 = vadd.f32 0.0, %v280
  %282 = vmatmul.f32.gmra.mxu0 %v257
  %v283 = vpop.f32.mrf.mxu0
  %v284 = vadd.f32 0.0, %v283
  %285 = vmatmul.f32.gmra.mxu0 %v259
  %v286 = vpop.f32.mrf.mxu0
  %v287 = vadd.f32 0.0, %v286
  %288 = vmatmul.f32.gmra.mxu0 %v261
  %v289 = vpop.f32.mrf.mxu0
  %v290 = vadd.f32 0.0, %v289
  %291 = vdwg.mxu0
  %292 = vmatpush.msra.mxu0 %v45
  %293 = vmatpush.msra.mxu0 %v44
  %294 = vmatpush.msra.mxu0 %v43
  %295 = vmatpush.msra.mxu0 %v42
  %296 = vmatpush.msra.mxu0 %v41
  %297 = vmatpush.msra.mxu0 %v40
  %298 = vmatpush.msra.mxu0 %v39
  %299 = vmatpush.msra.mxu0 %v38
  %300 = vmatpush.msra.mxu0 %v37
  %301 = vmatpush.msra.mxu0 %v36
  %302 = vmatpush.msra.mxu0 %v35
  %303 = vmatpush.msra.mxu0 %v34
  %304 = vmatpush.msra.mxu0 %v33
  %305 = vmatpush.msra.mxu0 %v32
  %306 = vmatpush.msra.mxu0 %v31
  %307 = vmatpush.msra.mxu0 %v30
  %308 = vmatmul.f32.gmra.mxu0 %v256
  %v309 = vpop.f32.mrf.mxu0
  %v310 = vadd.f32 %v281, %v309
  %311 = vmatmul.f32.gmra.mxu0 %v258
  %v312 = vpop.f32.mrf.mxu0
  %v313 = vadd.f32 %v284, %v312
  %314 = vmatmul.f32.gmra.mxu0 %v260
  %v315 = vpop.f32.mrf.mxu0
  %v316 = vadd.f32 %v287, %v315
  %317 = vmatmul.f32.gmra.mxu0 %v262
  %v318 = vpop.f32.mrf.mxu0
  %v319 = vadd.f32 %v290, %v318
  %320 = vdwg.mxu0
  %v321 = vmax.f32 %v250, %v310
  %v322 = vmax.f32 %v251, %v313
  %v323 = vmax.f32 %v252, %v316
  %v324 = vmax.f32 %v253, %v319
  %v325 = vld [vmem:[%s2] sm:$0x1]
  %v327 = vperm.slane %v325, 0
  %v329 = vadd.f32 %v321, %v327
  %v330 = vadd.f32 %v322, %v327
  %v331 = vadd.f32 %v323, %v327
  %v332 = vadd.f32 %v324, %v327
  %v333 = vmax.f32 %v329, 0.0
  %v334 = vmax.f32 %v330, 0.0
  %v335 = vmax.f32 %v331, 0.0
  %v336 = vmax.f32 %v332, 0.0
  %337 = vst [vmem:[%s3] sm:$0xff] %v333
  %338 = vst [vmem:[%s3 + $0x8] sm:$0xff] %v334
  %339 = vst [vmem:[%s3 + $0x10] sm:$0xff] %v335
  %340 = vst [vmem:[%s3 + $0x18] sm:$0xff] %v336
  // Predicated region
  $region14: #{net_forward.4} parent=0 // pred_check
    _
  $region15: #{net_forward.4} parent=0 // pred_check_branch
    %342 = sbr.rel (0) target = $region17
  $region16: #{net_forward.4} parent=0 // pred_region
    _
  $region17: #{net_forward.4} parent=0 // pred_fallthru
    _
  // Predicated region
  $region18: #{net_forward.4} parent=0 // pred_check
    _
  $region19: #{net_forward.4} parent=0 // pred_check_branch
    %344 = sbr.rel (0) target = $region21
  $region20: #{net_forward.4} parent=0 // pred_region
    _
  $region21: #{net_forward.4} parent=0 // pred_fallthru
    _

// kernel: net_forward.5
$region0: #{net_forward.5}
  #allocation0 [shape = 'u32[]', space=smem, size = 0x4, offset = 0x4, fixed_abs, tag = 'smem constant byte address 0x4 - core index']
  #allocation1 [shape = 'u32[72,128]{1,0:T(1,128)}', space=vmem, size = 0x9000, scoped, tag = 'internal scratch']
  %s0 = inlined_call_operand.vmem [shape: f32[8,384], index: 0, kind: input, shape index: {}]
  %s1 = inlined_call_operand.vmem [shape: f32[384,128], index: 1, kind: input, shape index: {}]
  %s2 = inlined_call_operand.vmem [shape: f32[1,128], index: 2, kind: input, shape index: {}]
  %s3 = inlined_call_operand.vmem [shape: f32[128,128], index: 3, kind: input, shape index: {}]
  %s4 = inlined_call_operand.vmem [shape: f32[1,128], index: 4, kind: input, shape index: {}]
  %s5 = inlined_call_operand.vmem [shape: f32[8,128], index: 5, kind: output, shape index: {}]
  %s6 = sld [smem:[#allocation0]]
  $region30: #{net_forward.5} parent=0
    _
  %s8 = ssub.s32 1, %s6
  %s9 = scalar_select 0, %s8, %s6
  // Predicated region
  $region2: #{net_forward.5} parent=0 // pred_check
    _
  $region3: #{net_forward.5} parent=0 // pred_check_branch
    %11 = sbr.rel (0) target = $region5
  $region4: #{net_forward.5} parent=0 // pred_region
    _
  $region5: #{net_forward.5} parent=0 // pred_fallthru
    _
  // Predicated region
  $region6: #{net_forward.5} parent=0 // pred_check
    _
  $region7: #{net_forward.5} parent=0 // pred_check_branch
    %13 = sbr.rel (0) target = $region9
  $region8: #{net_forward.5} parent=0 // pred_region
    _
  $region9: #{net_forward.5} parent=0 // pred_fallthru
    _
  // Predicated region
  $region10: #{net_forward.5} parent=0 // pred_check
    _
  $region11: #{net_forward.5} parent=0 // pred_check_branch
    %15 = sbr.rel (0) target = $region13
  $region12: #{net_forward.5} parent=0 // pred_region
    _
  $region13: #{net_forward.5} parent=0 // pred_fallthru
    _
  // Predicated region
  $region14: #{net_forward.5} parent=0 // pred_check
    _
  $region15: #{net_forward.5} parent=0 // pred_check_branch
    %17 = sbr.rel (0) target = $region17
  $region16: #{net_forward.5} parent=0 // pred_region
    _
  $region17: #{net_forward.5} parent=0 // pred_fallthru
    _
  // Predicated region
  $region18: #{net_forward.5} parent=0 // pred_check
    _
  $region19: #{net_forward.5} parent=0 // pred_check_branch
    %19 = sbr.rel (0) target = $region21
  $region20: #{net_forward.5} parent=0 // pred_region
    _
  $region21: #{net_forward.5} parent=0 // pred_fallthru
    _
  %v20 = vld [vmem:[%s0] sm:$0xff]
  %v21 = vld [vmem:[%s0 + $0x8] sm:$0xff]
  %v22 = vld [vmem:[%s0 + $0x10] sm:$0xff]
  %v23 = vld [vmem:[%s1] sm:$0xff]
  %v24 = vld [vmem:[%s1 + $0x8] sm:$0xff]
  %v25 = vld [vmem:[%s1 + $0x10] sm:$0xff]
  %v26 = vld [vmem:[%s1 + $0x18] sm:$0xff]
  %v27 = vld [vmem:[%s1 + $0x20] sm:$0xff]
  %v28 = vld [vmem:[%s1 + $0x28] sm:$0xff]
  %v29 = vld [vmem:[%s1 + $0x30] sm:$0xff]
  %v30 = vld [vmem:[%s1 + $0x38] sm:$0xff]
  %v31 = vld [vmem:[%s1 + $0x40] sm:$0xff]
  %v32 = vld [vmem:[%s1 + $0x48] sm:$0xff]
  %v33 = vld [vmem:[%s1 + $0x50] sm:$0xff]
  %v34 = vld [vmem:[%s1 + $0x58] sm:$0xff]
  %v35 = vld [vmem:[%s1 + $0x60] sm:$0xff]
  %v36 = vld [vmem:[%s1 + $0x68] sm:$0xff]
  %v37 = vld [vmem:[%s1 + $0x70] sm:$0xff]
  %v38 = vld [vmem:[%s1 + $0x78] sm:$0xff]
  %v39 = vld [vmem:[%s1 + $0x80] sm:$0xff]
  %v40 = vld [vmem:[%s1 + $0x88] sm:$0xff]
  %v41 = vld [vmem:[%s1 + $0x90] sm:$0xff]
  %v42 = vld [vmem:[%s1 + $0x98] sm:$0xff]
  %v43 = vld [vmem:[%s1 + $0xa0] sm:$0xff]
  %v44 = vld [vmem:[%s1 + $0xa8] sm:$0xff]
  %v45 = vld [vmem:[%s1 + $0xb0] sm:$0xff]
  %v46 = vld [vmem:[%s1 + $0xb8] sm:$0xff]
  %v47 = vld [vmem:[%s1 + $0xc0] sm:$0xff]
  %v48 = vld [vmem:[%s1 + $0xc8] sm:$0xff]
  %v49 = vld [vmem:[%s1 + $0xd0] sm:$0xff]
  %v50 = vld [vmem:[%s1 + $0xd8] sm:$0xff]
  %v51 = vld [vmem:[%s1 + $0xe0] sm:$0xff]
  %v52 = vld [vmem:[%s1 + $0xe8] sm:$0xff]
  %v53 = vld [vmem:[%s1 + $0xf0] sm:$0xff]
  %v54 = vld [vmem:[%s1 + $0xf8] sm:$0xff]
  %v55 = vld [vmem:[%s1 + $0x100] sm:$0xff]
  %v56 = vld [vmem:[%s1 + $0x108] sm:$0xff]
  %v57 = vld [vmem:[%s1 + $0x110] sm:$0xff]
  %v58 = vld [vmem:[%s1 + $0x118] sm:$0xff]
  %v59 = vld [vmem:[%s1 + $0x120] sm:$0xff]
  %v60 = vld [vmem:[%s1 + $0x128] sm:$0xff]
  %v61 = vld [vmem:[%s1 + $0x130] sm:$0xff]
  %v62 = vld [vmem:[%s1 + $0x138] sm:$0xff]
  %v63 = vld [vmem:[%s1 + $0x140] sm:$0xff]
  %v64 = vld [vmem:[%s1 + $0x148] sm:$0xff]
  %v65 = vld [vmem:[%s1 + $0x150] sm:$0xff]
  %v66 = vld [vmem:[%s1 + $0x158] sm:$0xff]
  %v67 = vld [vmem:[%s1 + $0x160] sm:$0xff]
  %v68 = vld [vmem:[%s1 + $0x168] sm:$0xff]
  %v69 = vld [vmem:[%s1 + $0x170] sm:$0xff]
  %v70 = vld [vmem:[%s1 + $0x178] sm:$0xff]
  %v71 = vld [vmem:[%s2] sm:$0x1]
  %v73 = vperm.slane %v71, 0
  %75 = vmatpush.msra.mxu0 %v38
  %76 = vmatpush.msra.mxu0 %v37
  %77 = vmatpush.msra.mxu0 %v36
  %78 = vmatpush.msra.mxu0 %v35
  %79 = vmatpush.msra.mxu0 %v34
  %80 = vmatpush.msra.mxu0 %v33
  %81 = vmatpush.msra.mxu0 %v32
  %82 = vmatpush.msra.mxu0 %v31
  %83 = vmatpush.msra.mxu0 %v30
  %84 = vmatpush.msra.mxu0 %v29
  %85 = vmatpush.msra.mxu0 %v28
  %86 = vmatpush.msra.mxu0 %v27
  %87 = vmatpush.msra.mxu0 %v26
  %88 = vmatpush.msra.mxu0 %v25
  %89 = vmatpush.msra.mxu0 %v24
  %90 = vmatpush.msra.mxu0 %v23
  %91 = vmatmul.f32.gmra.mxu0 %v20
  %v92 = vpop.f32.mrf.mxu0
  %v93 = vadd.f32 %v73, %v92
  %94 = vdwg.mxu0
  %95 = vmatpush.msra.mxu0 %v54
  %96 = vmatpush.msra.mxu0 %v53
  %97 = vmatpush.msra.mxu0 %v52
  %98 = vmatpush.msra.mxu0 %v51
  %99 = vmatpush.msra.mxu0 %v50
  %100 = vmatpush.msra.mxu0 %v49
  %101 = vmatpush.msra.mxu0 %v48
  %102 = vmatpush.msra.mxu0 %v47
  %103 = vmatpush.msra.mxu0 %v46
  %104 = vmatpush.msra.mxu0 %v45
  %105 = vmatpush.msra.mxu0 %v44
  %106 = vmatpush.msra.mxu0 %v43
  %107 = vmatpush.msra.mxu0 %v42
  %108 = vmatpush.msra.mxu0 %v41
  %109 = vmatpush.msra.mxu0 %v40
  %110 = vmatpush.msra.mxu0 %v39
  %111 = vmatmul.f32.gmra.mxu0 %v21
  %v112 = vpop.f32.mrf.mxu0
  %v113 = vadd.f32 %v93, %v112
  %114 = vdwg.mxu0
  %115 = vmatpush.msra.mxu0 %v70
  %116 = vmatpush.msra.mxu0 %v69
  %117 = vmatpush.msra.mxu0 %v68
  %118 = vmatpush.msra.mxu0 %v67
  %119 = vmatpush.msra.mxu0 %v66
  %120 = vmatpush.msra.mxu0 %v65
  %121 = vmatpush.msra.mxu0 %v64
  %122 = vmatpush.msra.mxu0 %v63
  %123 = vmatpush.msra.mxu0 %v62
  %124 = vmatpush.msra.mxu0 %v61
  %125 = vmatpush.msra.mxu0 %v60
  %126 = vmatpush.msra.mxu0 %v59
  %127 = vmatpush.msra.mxu0 %v58
  %128 = vmatpush.msra.mxu0 %v57
  %129 = vmatpush.msra.mxu0 %v56
  %130 = vmatpush.msra.mxu0 %v55
  %131 = vmatmul.f32.gmra.mxu0 %v22
  %v132 = vpop.f32.mrf.mxu0
  %v133 = vadd.f32 %v113, %v132
  %134 = vdwg.mxu0
  %v135 = vmax.f32 %v133, 0.0
  %v136 = vld [vmem:[%s3] sm:$0xff]
  %v137 = vld [vmem:[%s3 + $0x8] sm:$0xff]
  %v138 = vld [vmem:[%s3 + $0x10] sm:$0xff]
  %v139 = vld [vmem:[%s3 + $0x18] sm:$0xff]
  %v140 = vld [vmem:[%s3 + $0x20] sm:$0xff]
  %v141 = vld [vmem:[%s3 + $0x28] sm:$0xff]
  %v142 = vld [vmem:[%s3 + $0x30] sm:$0xff]
  %v143 = vld [vmem:[%s3 + $0x38] sm:$0xff]
  %v144 = vld [vmem:[%s3 + $0x40] sm:$0xff]
  %v145 = vld [vmem:[%s3 + $0x48] sm:$0xff]
  %v146 = vld [vmem:[%s3 + $0x50] sm:$0xff]
  %v147 = vld [vmem:[%s3 + $0x58] sm:$0xff]
  %v148 = vld [vmem:[%s3 + $0x60] sm:$0xff]
  %v149 = vld [vmem:[%s3 + $0x68] sm:$0xff]
  %v150 = vld [vmem:[%s3 + $0x70] sm:$0xff]
  %v151 = vld [vmem:[%s3 + $0x78] sm:$0xff]
  %v152 = vld [vmem:[%s4] sm:$0x1]
  %v154 = vperm.slane %v152, 0
  %156 = vmatpush.msra.mxu0 %v151
  %157 = vmatpush.msra.mxu0 %v150
  %158 = vmatpush.msra.mxu0 %v149
  %159 = vmatpush.msra.mxu0 %v148
  %160 = vmatpush.msra.mxu0 %v147
  %161 = vmatpush.msra.mxu0 %v146
  %162 = vmatpush.msra.mxu0 %v145
  %163 = vmatpush.msra.mxu0 %v144
  %164 = vmatpush.msra.mxu0 %v143
  %165 = vmatpush.msra.mxu0 %v142
  %166 = vmatpush.msra.mxu0 %v141
  %167 = vmatpush.msra.mxu0 %v140
  %168 = vmatpush.msra.mxu0 %v139
  %169 = vmatpush.msra.mxu0 %v138
  %170 = vmatpush.msra.mxu0 %v137
  %171 = vmatpush.msra.mxu0 %v136
  %172 = vmatmul.f32.gmra.mxu0 %v135
  %v173 = vpop.f32.mrf.mxu0
  %v174 = vadd.f32 %v154, %v173
  %175 = vdwg.mxu0
  %v176 = vlaneseq
  %v177 = vand.u32 %v176, 127
  %vm178 = vcmp.lt.s32.totalorder %v177, 10
  %v179 = vsel %vm178, %v174, -1e+30
  %180 = vmax.xlane.f32.xlu0 %v179
  %v181 = vpop.xlane.xlu0 %180
  %v182 = vsub.f32 %v179, %v181
  %v183 = vmul.f32 %v182, 1.442695
  %v184 = vpow.pop %v183
  %185 = vadd.xlane.f32.xlu0 %v184
  %v186 = vpop.xlane.xlu0 %185
  %v187 = vlog2.pop %v186
  %v188 = vmul.f32 %v187, 0.6931472
  %v189 = vsub.f32 %v182, %v188
  %190 = vst [vmem:[%s5] sm:$0xff] %v189
  // Predicated region
  $region22: #{net_forward.5} parent=0 // pred_check
    _
  $region23: #{net_forward.5} parent=0 // pred_check_branch
    %192 = sbr.rel (0) target = $region25
  $region24: #{net_forward.5} parent=0 // pred_region
    _
  $region25: #{net_forward.5} parent=0 // pred_fallthru
    _
  // Predicated region
  $region26: #{net_forward.5} parent=0 // pred_check
    _
  $region27: #{net_forward.5} parent=0 // pred_check_branch
    %194 = sbr.rel (0) target = $region29
  $region28: #{net_forward.5} parent=0 // pred_region
    _
  $region29: #{net_forward.5} parent=0 // pred_fallthru
    _

</llo_original>
